<compile_context>
chip_gen: v7x
topology: tpu7x:2x2x1
jax: 0.10.0
libtpu: 0.0.40
codegen_flags: <defaults>
</compile_context>

<pallas_src>
import functools

import jax
import jax.numpy as jnp
from jax.experimental import pallas as pl
from jax.experimental.pallas import tpu as pltpu

F_PAD = 128  # lane-dense feature width; every per-layer feature dim is zero-padded to this


# ---------------------------------------------------------------------------
# Fused Pallas kernel: the whole ChebConv stack + ReLU + log_softmax, one grid step.
# ---------------------------------------------------------------------------
def _cheby_stack_kernel(a_ref, a2_ref, x_ref, w_ref, b_ref, o_ref, *,
                        n_layers, K, out_channels):
    """Refs:
      a_ref : (N, N)                    bf16  scaled Laplacian L_hat
      a2_ref: (N, N)                    bf16  2 * L_hat (folds the recurrence scale into MXU)
      x_ref : (N, F_PAD)                bf16  zero-padded input features
      w_ref : (L, K*F_PAD, F_PAD)       bf16  per-layer weights, K blocks stacked on contraction axis
      b_ref : (L, 1, F_PAD)             f32   per-layer bias
      o_ref : (N, F_PAD)                f32   output (log-probs), written once
    """
    a = a_ref[...]        # resident bf16 MXU operand
    a2 = a2_ref[...]      # resident bf16 MXU operand (= 2 * L_hat)
    x_bf = x_ref[...]     # bf16 layer carry

    out = None
    for layer in range(n_layers):                       # static unroll: no per-layer grid steps
        # Chebyshev basis; keep each T_k as bf16 for the fused contraction,
        # keep the recurrence state in f32 for the subtraction.
        ts = [x_bf]                                     # T_0 x = x
        if K > 1:
            t1 = jnp.dot(a, x_bf, preferred_element_type=jnp.float32)   # T_1 x = L_hat x
            ts.append(t1.astype(jnp.bfloat16))
            t_prev, t_cur = x_bf.astype(jnp.float32), t1
        for _ in range(2, K):                           # T_k = 2 L_hat T_{k-1} - T_{k-2}
            t_next = jnp.dot(a2, t_cur.astype(jnp.bfloat16),
                             preferred_element_type=jnp.float32) - t_prev
            ts.append(t_next.astype(jnp.bfloat16))
            t_prev, t_cur = t_cur, t_next

        # Single fused contraction over all K orders: (N, K*F_PAD) @ (K*F_PAD, F_PAD)
        tx_cat = jnp.concatenate(ts, axis=-1)
        acc = jnp.dot(tx_cat, w_ref[layer], preferred_element_type=jnp.float32)

        # bias + ReLU in f32.  ReLU is applied after EVERY conv (incl. the last), per the spec.
        # TODO(synk): training-mode dropout not implemented (eval mode -> identity).
        out = jnp.maximum(acc + b_ref[layer], 0.0)
        x_bf = out.astype(jnp.bfloat16)                 # next layer's input (bf16 carry)

    # Epilogue: log_softmax over the real (un-padded) output channels only.
    lane = jax.lax.broadcasted_iota(jnp.int32, out.shape, 1)
    valid = lane < out_channels
    z = jnp.where(valid, out, -1e30)
    m = jnp.max(z, axis=-1, keepdims=True)
    lse = jnp.log(jnp.sum(jnp.exp(z - m), axis=-1, keepdims=True))
    o_ref[...] = jnp.where(valid, z - m - lse, 0.0)     # written exactly once


def cheby_forward(l_hat, x, w_packed, b_packed, *, out_channels):
    """Fused forward: all ChebConv layers + ReLU + final log_softmax in one pallas_call."""
    n = x.shape[0]
    n_layers = int(w_packed.shape[0])
    K = int(w_packed.shape[1]) // F_PAD

    x_pad = jnp.zeros((n, F_PAD), jnp.float32).at[:, : x.shape[1]].set(x).astype(jnp.bfloat16)
    a_bf = l_hat.astype(jnp.bfloat16)
    a2_bf = (2.0 * l_hat).astype(jnp.bfloat16)

    kernel = functools.partial(_cheby_stack_kernel,
                               n_layers=n_layers, K=K, out_channels=out_channels)

    flops = int(n_layers * (2 * n * n * F_PAD * max(K - 1, 0)      # L_hat @ T matmuls
                            + 2 * n * (K * F_PAD) * F_PAD))        # fused weight contraction
    bytes_accessed = int(2 * a_bf.size * 2 + x_pad.size * 2
                         + w_packed.size * 2 + b_packed.size * 4 + n * F_PAD * 4)

    out_padded = pl.pallas_call(
        kernel,
        out_shape=jax.ShapeDtypeStruct((n, F_PAD), jnp.float32),
        grid_spec=pltpu.PrefetchScalarGridSpec(
            num_scalar_prefetch=0,
            grid=(1,),                                   # single step: everything resident in VMEM
            in_specs=[
                pl.BlockSpec((n, n), lambda i: (0, 0)),                          # L_hat
                pl.BlockSpec((n, n), lambda i: (0, 0)),                          # 2*L_hat
                pl.BlockSpec((n, F_PAD), lambda i: (0, 0)),                      # x0 (padded)
                pl.BlockSpec((n_layers, K * F_PAD, F_PAD), lambda i: (0, 0, 0)), # all weights
                pl.BlockSpec((n_layers, 1, F_PAD), lambda i: (0, 0, 0)),         # all biases
            ],
            out_specs=pl.BlockSpec((n, F_PAD), lambda i: (0, 0)),
        ),
        compiler_params=pltpu.CompilerParams(dimension_semantics=("arbitrary",)),
        cost_estimate=pl.CostEstimate(flops=flops,
                                      transcendentals=int(n * F_PAD + n),
                                      bytes_accessed=bytes_accessed),
    )(a_bf, a2_bf, x_pad, w_packed, b_packed)
    return out_padded[:, :out_channels]


# ---------------------------------------------------------------------------
# Plain-JAX glue: graph operator, parameter init/packing, reference.
# ---------------------------------------------------------------------------
def build_cheb_operator(edge_index, num_nodes, edge_weight=None):
    """Dense scaled Laplacian L_hat = -D^-1/2 A D^-1/2 (sym norm, lambda_max=2), matching
    PyG ChebConv.__norm__: self-loops removed, duplicate edges summed, degree from source."""
    src, dst = edge_index[0], edge_index[1]
    if edge_weight is None:
        edge_weight = jnp.ones(src.shape, jnp.float32)
    w = jnp.where(src == dst, 0.0, edge_weight)                       # remove self-loops
    deg = jnp.zeros((num_nodes,), jnp.float32).at[src].add(w)
    dinv = jnp.where(deg > 0, jax.lax.rsqrt(jnp.maximum(deg, 1e-12)), 0.0)
    norm = dinv[src] * w * dinv[dst]
    a = jnp.zeros((num_nodes, num_nodes), jnp.float32).at[dst, src].add(norm)
    return -a


def init_params(key, in_channels, hidden_units, out_channels, number_layers, K):
    """Per layer: K weight matrices (F_in, F_out) + bias (F_out,)."""
    dims = [in_channels] + [hidden_units] * (number_layers - 1) + [out_channels]
    params = []
    for i in range(number_layers):
        fi, fo = dims[i], dims[i + 1]
        key, kw, kb = jax.random.split(key, 3)
        scale = 1.0 / float(fi * K) ** 0.5
        ws = jax.random.uniform(kw, (K, fi, fo), jnp.float32, -scale, scale)
        b = jax.random.uniform(kb, (fo,), jnp.float32, -scale, scale)
        params.append((ws, b))
    return params


def pack_params(params):
    """Zero-pad and stack each layer's K weights along the contraction axis:
    (L, K*F_PAD, F_PAD) bf16; bias (L, 1, F_PAD) f32."""
    n_layers = len(params)
    K = params[0][0].shape[0]
    w = jnp.zeros((n_layers, K * F_PAD, F_PAD), jnp.float32)
    b = jnp.zeros((n_layers, 1, F_PAD), jnp.float32)
    for l, (ws, bias) in enumerate(params):
        fi, fo = ws.shape[1], ws.shape[2]
        for k in range(K):
            w = w.at[l, k * F_PAD: k * F_PAD + fi, :fo].set(ws[k])
        b = b.at[l, 0, :fo].set(bias)
    return w.astype(jnp.bfloat16), b


def reference_forward(l_hat, x, params, K):
    """Pure-JAX reference with the same precision policy (bf16 MXU operands, f32 accum,
    bf16 layer carry)."""
    a = l_hat.astype(jnp.bfloat16)
    xb = x.astype(jnp.bfloat16)
    out = None
    for ws, bias in params:
        ts = [xb]
        if K > 1:
            t1 = jnp.dot(a, xb, preferred_element_type=jnp.float32)
            ts.append(t1.astype(jnp.bfloat16))
            tp, tc = xb.astype(jnp.float32), t1
        for _ in range(2, K):
            tn = 2.0 * jnp.dot(a, tc.astype(jnp.bfloat16),
                               preferred_element_type=jnp.float32) - tp
            ts.append(tn.astype(jnp.bfloat16))
            tp, tc = tc, tn
        acc = sum(jnp.dot(ts[k], ws[k].astype(jnp.bfloat16),
                          preferred_element_type=jnp.float32) for k in range(K))
        out = jnp.maximum(acc + bias, 0.0)
        xb = out.astype(jnp.bfloat16)
    return jax.nn.log_softmax(out, axis=-1)


if __name__ == "__main__":
    N, E = 32, 96
    in_channels, hidden_units, out_channels, number_layers = 16, 32, 8, 3
    K_Cheby = 3   # kwargs['K_Cheby']; graph_classification=False, dropout=0.5 (eval)

    key = jax.random.PRNGKey(0)
    kx, ks, kd, kp = jax.random.split(key, 4)
    x = jax.random.normal(kx, (N, in_channels), jnp.float32)
    src = jax.random.randint(ks, (E,), 0, N, dtype=jnp.int32)
    dst = jax.random.randint(kd, (E,), 0, N, dtype=jnp.int32)
    edge_index = jnp.stack([src, dst], axis=0)

    l_hat = build_cheb_operator(edge_index, N)  # edge_attr=None -> unit weights
    params = init_params(kp, in_channels, hidden_units, out_channels, number_layers, K_Cheby)
    w_packed, b_packed = pack_params(params)

    out = cheby_forward(l_hat, x, w_packed, b_packed, out_channels=out_channels)
    out = jax.block_until_ready(out)

    ref = reference_forward(l_hat, x, params, K_Cheby)
    assert out.shape == (N, out_channels)
    assert bool(jnp.all(jnp.isfinite(out))), "non-finite values in kernel output"
    assert jnp.allclose(out, ref, atol=1e-3, rtol=1e-3), "mismatch vs JAX reference"

    print("KERNEL_OK")
</pallas_src>

<mosaic_0001>
module attributes {stable_mosaic.version = 11 : i64} {
  func.func @_cheby_stack_kernel(%arg0: i32, %arg1: memref<32x32xbf16, #tpu.memory_space<vmem>>, %arg2: memref<32x32xbf16, #tpu.memory_space<vmem>>, %arg3: memref<32x128xbf16, #tpu.memory_space<vmem>>, %arg4: memref<3x384x128xbf16, #tpu.memory_space<vmem>>, %arg5: memref<3x1x128xf32, #tpu.memory_space<vmem>>, %arg6: memref<32x128xf32, #tpu.memory_space<vmem>>) attributes {dimension_semantics = [#tpu.dimension_semantics<arbitrary>], iteration_bounds = array<i64: 1>, scalar_prefetch = 0 : i64, scratch_operands = 0 : i64, tpu.core_type = #tpu.core_type<tc>, window_params = [{pipeline_mode = #tpu.pipeline_mode<synchronous>, transform_indices = @transform_0, window_bounds = array<i64: 32, 32>}, {pipeline_mode = #tpu.pipeline_mode<synchronous>, transform_indices = @transform_1, window_bounds = array<i64: 32, 32>}, {pipeline_mode = #tpu.pipeline_mode<synchronous>, transform_indices = @transform_2, window_bounds = array<i64: 32, 128>}, {pipeline_mode = #tpu.pipeline_mode<synchronous>, transform_indices = @transform_3, window_bounds = array<i64: 3, 384, 128>}, {pipeline_mode = #tpu.pipeline_mode<synchronous>, transform_indices = @transform_4, window_bounds = array<i64: 3, 1, 128>}, {pipeline_mode = #tpu.pipeline_mode<synchronous>, transform_indices = @transform_5, window_bounds = array<i64: 32, 128>}]} {
    %c0 = arith.constant 0 : index
    %c0_0 = arith.constant 0 : index
    %0 = vector.load %arg1[%c0, %c0_0] : memref<32x32xbf16, #tpu.memory_space<vmem>>, vector<32x32xbf16>
    %c0_1 = arith.constant 0 : index
    %c0_2 = arith.constant 0 : index
    %1 = vector.load %arg2[%c0_1, %c0_2] : memref<32x32xbf16, #tpu.memory_space<vmem>>, vector<32x32xbf16>
    %c0_3 = arith.constant 0 : index
    %c0_4 = arith.constant 0 : index
    %2 = vector.load %arg3[%c0_3, %c0_4] : memref<32x128xbf16, #tpu.memory_space<vmem>>, vector<32x128xbf16>
    %cst = arith.constant dense<0.000000e+00> : vector<32x128xf32>
    %3 = tpu.matmul %0, %2, %cst {dimension_numbers = #tpu.dot_dimension_numbers<[1], [0], [0], [1], [0, 0, 1, 1], [], []>} : vector<32x32xbf16>, vector<32x128xbf16>, vector<32x128xf32> -> vector<32x128xf32>
    %4 = arith.truncf %3 : vector<32x128xf32> to vector<32x128xbf16>
    %5 = arith.extf %2 : vector<32x128xbf16> to vector<32x128xf32>
    %6 = arith.truncf %3 : vector<32x128xf32> to vector<32x128xbf16>
    %cst_5 = arith.constant dense<0.000000e+00> : vector<32x128xf32>
    %7 = tpu.matmul %1, %6, %cst_5 {dimension_numbers = #tpu.dot_dimension_numbers<[1], [0], [0], [1], [0, 0, 1, 1], [], []>} : vector<32x32xbf16>, vector<32x128xbf16>, vector<32x128xf32> -> vector<32x128xf32>
    %8 = arith.subf %7, %5 : vector<32x128xf32>
    %9 = arith.truncf %8 : vector<32x128xf32> to vector<32x128xbf16>
    %10 = tpu.concatenate %2, %4, %9 in 1 : vector<32x128xbf16>, vector<32x128xbf16>, vector<32x128xbf16> -> vector<32x384xbf16>
    %c0_6 = arith.constant 0 : index
    %c0_7 = arith.constant 0 : index
    %c0_8 = arith.constant 0 : index
    %11 = vector.load %arg4[%c0_6, %c0_7, %c0_8] : memref<3x384x128xbf16, #tpu.memory_space<vmem>>, vector<1x384x128xbf16>
    %12 = vector.shape_cast %11 : vector<1x384x128xbf16> to vector<384x128xbf16>
    %cst_9 = arith.constant dense<0.000000e+00> : vector<32x128xf32>
    %13 = tpu.matmul %10, %12, %cst_9 {dimension_numbers = #tpu.dot_dimension_numbers<[1], [0], [0], [1], [0, 0, 1, 1], [], []>} : vector<32x384xbf16>, vector<384x128xbf16>, vector<32x128xf32> -> vector<32x128xf32>
    %c0_10 = arith.constant 0 : index
    %c0_11 = arith.constant 0 : index
    %c0_12 = arith.constant 0 : index
    %14 = vector.load %arg5[%c0_10, %c0_11, %c0_12] : memref<3x1x128xf32, #tpu.memory_space<vmem>>, vector<1x1x128xf32>
    %15 = vector.shape_cast %14 : vector<1x1x128xf32> to vector<1x128xf32>
    %16 = vector.broadcast %15 : vector<1x128xf32> to vector<32x128xf32>
    %17 = arith.addf %13, %16 : vector<32x128xf32>
    %cst_13 = arith.constant 0.000000e+00 : f32
    %18 = vector.broadcast %cst_13 : f32 to vector<32x128xf32>
    %19 = arith.maximumf %17, %18 : vector<32x128xf32>
    %20 = arith.truncf %19 : vector<32x128xf32> to vector<32x128xbf16>
    %cst_14 = arith.constant dense<0.000000e+00> : vector<32x128xf32>
    %21 = tpu.matmul %0, %20, %cst_14 {dimension_numbers = #tpu.dot_dimension_numbers<[1], [0], [0], [1], [0, 0, 1, 1], [], []>} : vector<32x32xbf16>, vector<32x128xbf16>, vector<32x128xf32> -> vector<32x128xf32>
    %22 = arith.truncf %21 : vector<32x128xf32> to vector<32x128xbf16>
    %23 = arith.extf %20 : vector<32x128xbf16> to vector<32x128xf32>
    %24 = arith.truncf %21 : vector<32x128xf32> to vector<32x128xbf16>
    %cst_15 = arith.constant dense<0.000000e+00> : vector<32x128xf32>
    %25 = tpu.matmul %1, %24, %cst_15 {dimension_numbers = #tpu.dot_dimension_numbers<[1], [0], [0], [1], [0, 0, 1, 1], [], []>} : vector<32x32xbf16>, vector<32x128xbf16>, vector<32x128xf32> -> vector<32x128xf32>
    %26 = arith.subf %25, %23 : vector<32x128xf32>
    %27 = arith.truncf %26 : vector<32x128xf32> to vector<32x128xbf16>
    %28 = tpu.concatenate %20, %22, %27 in 1 : vector<32x128xbf16>, vector<32x128xbf16>, vector<32x128xbf16> -> vector<32x384xbf16>
    %c1 = arith.constant 1 : index
    %c0_16 = arith.constant 0 : index
    %c0_17 = arith.constant 0 : index
    %29 = vector.load %arg4[%c1, %c0_16, %c0_17] : memref<3x384x128xbf16, #tpu.memory_space<vmem>>, vector<1x384x128xbf16>
    %30 = vector.shape_cast %29 : vector<1x384x128xbf16> to vector<384x128xbf16>
    %cst_18 = arith.constant dense<0.000000e+00> : vector<32x128xf32>
    %31 = tpu.matmul %28, %30, %cst_18 {dimension_numbers = #tpu.dot_dimension_numbers<[1], [0], [0], [1], [0, 0, 1, 1], [], []>} : vector<32x384xbf16>, vector<384x128xbf16>, vector<32x128xf32> -> vector<32x128xf32>
    %c1_19 = arith.constant 1 : index
    %c0_20 = arith.constant 0 : index
    %c0_21 = arith.constant 0 : index
    %32 = vector.load %arg5[%c1_19, %c0_20, %c0_21] : memref<3x1x128xf32, #tpu.memory_space<vmem>>, vector<1x1x128xf32>
    %33 = vector.shape_cast %32 : vector<1x1x128xf32> to vector<1x128xf32>
    %34 = vector.broadcast %33 : vector<1x128xf32> to vector<32x128xf32>
    %35 = arith.addf %31, %34 : vector<32x128xf32>
    %cst_22 = arith.constant 0.000000e+00 : f32
    %36 = vector.broadcast %cst_22 : f32 to vector<32x128xf32>
    %37 = arith.maximumf %35, %36 : vector<32x128xf32>
    %38 = arith.truncf %37 : vector<32x128xf32> to vector<32x128xbf16>
    %cst_23 = arith.constant dense<0.000000e+00> : vector<32x128xf32>
    %39 = tpu.matmul %0, %38, %cst_23 {dimension_numbers = #tpu.dot_dimension_numbers<[1], [0], [0], [1], [0, 0, 1, 1], [], []>} : vector<32x32xbf16>, vector<32x128xbf16>, vector<32x128xf32> -> vector<32x128xf32>
    %40 = arith.truncf %39 : vector<32x128xf32> to vector<32x128xbf16>
    %41 = arith.extf %38 : vector<32x128xbf16> to vector<32x128xf32>
    %42 = arith.truncf %39 : vector<32x128xf32> to vector<32x128xbf16>
    %cst_24 = arith.constant dense<0.000000e+00> : vector<32x128xf32>
    %43 = tpu.matmul %1, %42, %cst_24 {dimension_numbers = #tpu.dot_dimension_numbers<[1], [0], [0], [1], [0, 0, 1, 1], [], []>} : vector<32x32xbf16>, vector<32x128xbf16>, vector<32x128xf32> -> vector<32x128xf32>
    %44 = arith.subf %43, %41 : vector<32x128xf32>
    %45 = arith.truncf %44 : vector<32x128xf32> to vector<32x128xbf16>
    %46 = tpu.concatenate %38, %40, %45 in 1 : vector<32x128xbf16>, vector<32x128xbf16>, vector<32x128xbf16> -> vector<32x384xbf16>
    %c2 = arith.constant 2 : index
    %c0_25 = arith.constant 0 : index
    %c0_26 = arith.constant 0 : index
    %47 = vector.load %arg4[%c2, %c0_25, %c0_26] : memref<3x384x128xbf16, #tpu.memory_space<vmem>>, vector<1x384x128xbf16>
    %48 = vector.shape_cast %47 : vector<1x384x128xbf16> to vector<384x128xbf16>
    %cst_27 = arith.constant dense<0.000000e+00> : vector<32x128xf32>
    %49 = tpu.matmul %46, %48, %cst_27 {dimension_numbers = #tpu.dot_dimension_numbers<[1], [0], [0], [1], [0, 0, 1, 1], [], []>} : vector<32x384xbf16>, vector<384x128xbf16>, vector<32x128xf32> -> vector<32x128xf32>
    %c2_28 = arith.constant 2 : index
    %c0_29 = arith.constant 0 : index
    %c0_30 = arith.constant 0 : index
    %50 = vector.load %arg5[%c2_28, %c0_29, %c0_30] : memref<3x1x128xf32, #tpu.memory_space<vmem>>, vector<1x1x128xf32>
    %51 = vector.shape_cast %50 : vector<1x1x128xf32> to vector<1x128xf32>
    %52 = vector.broadcast %51 : vector<1x128xf32> to vector<32x128xf32>
    %53 = arith.addf %49, %52 : vector<32x128xf32>
    %cst_31 = arith.constant 0.000000e+00 : f32
    %54 = vector.broadcast %cst_31 : f32 to vector<32x128xf32>
    %55 = arith.maximumf %53, %54 : vector<32x128xf32>
    %56 = tpu.iota {dimensions = array<i32: 1>} : vector<32x128xi32>
    %c8_i32 = arith.constant 8 : i32
    %57 = vector.broadcast %c8_i32 : i32 to vector<32x128xi32>
    %58 = arith.cmpi slt, %56, %57 : vector<32x128xi32>
    %cst_32 = arith.constant -1.000000e+30 : f32
    %59 = vector.broadcast %cst_32 : f32 to vector<32x128xf32>
    %60 = arith.select %58, %55, %59 : vector<32x128xi1>, vector<32x128xf32>
    %cst_33 = arith.constant dense<0xFF800000> : vector<32xf32>
    %61 = vector.multi_reduction <maximumf>, %60, %cst_33 [1] : vector<32x128xf32> to vector<32xf32>
    %62 = vector.shape_cast %61 : vector<32xf32> to vector<32x1xf32>
    %63 = vector.broadcast %62 : vector<32x1xf32> to vector<32x128xf32>
    %64 = arith.subf %60, %63 : vector<32x128xf32>
    %65 = math.exp %64 : vector<32x128xf32>
    %cst_34 = arith.constant dense<0.000000e+00> : vector<32xf32>
    %66 = vector.multi_reduction <add>, %65, %cst_34 [1] : vector<32x128xf32> to vector<32xf32>
    %67 = vector.shape_cast %66 : vector<32xf32> to vector<32x1xf32>
    %68 = math.log %67 : vector<32x1xf32>
    %69 = vector.broadcast %62 : vector<32x1xf32> to vector<32x128xf32>
    %70 = arith.subf %60, %69 : vector<32x128xf32>
    %71 = vector.broadcast %68 : vector<32x1xf32> to vector<32x128xf32>
    %72 = arith.subf %70, %71 : vector<32x128xf32>
    %cst_35 = arith.constant 0.000000e+00 : f32
    %73 = vector.broadcast %cst_35 : f32 to vector<32x128xf32>
    %74 = arith.select %58, %72, %73 : vector<32x128xi1>, vector<32x128xf32>
    %c0_36 = arith.constant 0 : index
    %c0_37 = arith.constant 0 : index
    %75 = vector.load %arg6[%c0_36, %c0_37] : memref<32x128xf32, #tpu.memory_space<vmem>>, vector<32x128xf32>
    tpu.vector_store %arg6[%c0_36, %c0_37], %74 {strides = array<i32>} : memref<32x128xf32, #tpu.memory_space<vmem>>, vector<32x128xf32>,
    return
  }
  func.func @transform_0(%arg0: i32) -> (i32, i32) {
    %c0_i32 = arith.constant 0 : i32
    %c0_i32_0 = arith.constant 0 : i32
    %c0_i32_1 = arith.constant 0 : i32
    return %c0_i32, %c0_i32_0 : i32, i32
  }
  func.func @transform_1(%arg0: i32) -> (i32, i32) {
    %c0_i32 = arith.constant 0 : i32
    %c0_i32_0 = arith.constant 0 : i32
    %c0_i32_1 = arith.constant 0 : i32
    return %c0_i32, %c0_i32_0 : i32, i32
  }
  func.func @transform_2(%arg0: i32) -> (i32, i32) {
    %c0_i32 = arith.constant 0 : i32
    %c0_i32_0 = arith.constant 0 : i32
    %c0_i32_1 = arith.constant 0 : i32
    return %c0_i32, %c0_i32_0 : i32, i32
  }
  func.func @transform_3(%arg0: i32) -> (i32, i32, i32) {
    %c0_i32 = arith.constant 0 : i32
    %c0_i32_0 = arith.constant 0 : i32
    %c0_i32_1 = arith.constant 0 : i32
    %c0_i32_2 = arith.constant 0 : i32
    return %c0_i32, %c0_i32_0, %c0_i32_1 : i32, i32, i32
  }
  func.func @transform_4(%arg0: i32) -> (i32, i32, i32) {
    %c0_i32 = arith.constant 0 : i32
    %c0_i32_0 = arith.constant 0 : i32
    %c0_i32_1 = arith.constant 0 : i32
    %c0_i32_2 = arith.constant 0 : i32
    return %c0_i32, %c0_i32_0, %c0_i32_1 : i32, i32, i32
  }
  func.func @transform_5(%arg0: i32) -> (i32, i32) {
    %c0_i32 = arith.constant 0 : i32
    %c0_i32_0 = arith.constant 0 : i32
    %c0_i32_1 = arith.constant 0 : i32
    return %c0_i32, %c0_i32_0 : i32, i32
  }
}

</mosaic_0001>

<llo_original>
// kernel: tpu_custom_call.1
$region0: #{tpu_custom_call.1}
  #allocation0 [shape = 'u32[]', space=smem, size = 0x4, offset = 0x4, fixed_abs, tag = 'smem constant byte address 0x4 - core index']
  #allocation1 [shape = 'u32[144,128]{1,0:T(1,128)}', space=vmem, size = 0x12000, scoped, tag = 'internal scratch']
  %s0 = inlined_call_operand.hbm [shape: bf16[32,32], index: 0, kind: input, shape index: {}]
  %s1 = inlined_call_operand.hbm [shape: bf16[32,32], index: 1, kind: input, shape index: {}]
  %s2 = inlined_call_operand.hbm [shape: bf16[32,128], index: 2, kind: input, shape index: {}]
  %s3 = inlined_call_operand.hbm [shape: bf16[3,384,128], index: 3, kind: input, shape index: {}]
  %s4 = inlined_call_operand.vmem [shape: f32[3,1,128], index: 4, kind: input, shape index: {}]
  %s5 = inlined_call_operand.hbm [shape: f32[32,128], index: 5, kind: output, shape index: {}]
  %s6 = sld [smem:[#allocation0]]
  $region46: #{tpu_custom_call.1} parent=0
    _
  %s8 = ssub.s32 1, %s6
  %s9 = scalar_select 0, %s8, %s6
  $region1: #{tpu_custom_call.1} parent=0
    #allocation2 [shape = 'u8[8192]{0}', space=vmem, size = 0x2000, scoped, tag = 'input window, operand 0, single buffered']
    #allocation3 [shape = 's32[1]{0}', space=sflag, size = 0x4, scoped, tag = 'scoped memory for tpu_custom_call.1']
    #allocation4 [shape = 's32[1]{0}', space=sflag, size = 0x4, scoped, tag = 'scoped memory for tpu_custom_call.1']
    #allocation5 [shape = 'u8[8192]{0}', space=vmem, size = 0x2000, scoped, tag = 'input window, operand 1, single buffered']
    #allocation6 [shape = 's32[1]{0}', space=sflag, size = 0x4, scoped, tag = 'scoped memory for tpu_custom_call.1']
    #allocation7 [shape = 'u8[8192]{0}', space=vmem, size = 0x2000, scoped, tag = 'input window, operand 2, single buffered']
    #allocation8 [shape = 'u8[294912]{0}', space=vmem, size = 0x48000, scoped, tag = 'input window, operand 3, single buffered']
    #allocation9 [shape = 's32[1]{0}', space=sflag, size = 0x4, scoped, tag = 'scoped memory for tpu_custom_call.1']
    #allocation10 [shape = 'u8[16384]{0}', space=vmem, size = 0x4000, scoped, tag = 'output window, operand 0, single buffered']
    %10 = vsyncpa [#allocation3], 0
    %11 = vsyncpa [#allocation6], 0
    %12 = vsyncpa [#allocation9], 0
    %13 = vsyncpa [#allocation4], 0
    // Predicated region
    $region2: #{tpu_custom_call.1} parent=1 // pred_check
      _
    $region3: #{tpu_custom_call.1} parent=1 // pred_check_branch
      %15 = sbr.rel (0) target = $region5
    $region4: #{tpu_custom_call.1} parent=1 // pred_region
      %s17 = ssub.s32 256, 256
      %18 = vsyncadd [#allocation3], %s17
      %s19 = sshll.u32 [#allocation2], 4
      %s20 = int_to_ptr.vmem [resolvable:$true] %s19
      %25 = dma.hbm_to_vmem [thread:$0]  %s0, 256, %s20, [#allocation3], 64, 64, 4
    $region5: #{tpu_custom_call.1} parent=1 // pred_fallthru
      _
    // Predicated region
    $region6: #{tpu_custom_call.1} parent=1 // pred_check
      _
    $region7: #{tpu_custom_call.1} parent=1 // pred_check_branch
      %27 = sbr.rel (0) target = $region9
    $region8: #{tpu_custom_call.1} parent=1 // pred_region
      %s29 = ssub.s32 256, 256
      %30 = vsyncadd [#allocation6], %s29
      %s31 = sshll.u32 [#allocation5], 4
      %s32 = int_to_ptr.vmem [resolvable:$true] %s31
      %37 = dma.hbm_to_vmem [thread:$0]  %s1, 256, %s32, [#allocation6], 64, 64, 4
    $region9: #{tpu_custom_call.1} parent=1 // pred_fallthru
      _
    // Predicated region
    $region10: #{tpu_custom_call.1} parent=1 // pred_check
      _
    $region11: #{tpu_custom_call.1} parent=1 // pred_check_branch
      %39 = sbr.rel (0) target = $region13
    $region12: #{tpu_custom_call.1} parent=1 // pred_region
      %s41 = ssub.s32 256, 256
      %42 = vsyncadd [#allocation6], %s41
      %s43 = sshll.u32 [#allocation7], 4
      %s44 = int_to_ptr.vmem [resolvable:$true] %s43
      %49 = dma.hbm_to_vmem [thread:$0]  %s2, 256, %s44, [#allocation6], 64, 64, 4
    $region13: #{tpu_custom_call.1} parent=1 // pred_fallthru
      _
    // Predicated region
    $region14: #{tpu_custom_call.1} parent=1 // pred_check
      _
    $region15: #{tpu_custom_call.1} parent=1 // pred_check_branch
      %51 = sbr.rel (0) target = $region17
    $region16: #{tpu_custom_call.1} parent=1 // pred_region
      %s53 = ssub.s32 9216, 9216
      %54 = vsyncadd [#allocation9], %s53
      %s55 = sshll.u32 [#allocation8], 4
      %s56 = int_to_ptr.vmem [resolvable:$true] %s55
      %61 = dma.hbm_to_vmem [thread:$0]  %s3, 9216, %s56, [#allocation9], 64, 64, 4
    $region17: #{tpu_custom_call.1} parent=1 // pred_fallthru
      _
    // Predicated region
    $region18: #{tpu_custom_call.1} parent=1 // pred_check
      _
    $region19: #{tpu_custom_call.1} parent=1 // pred_check_branch
      %63 = sbr.rel (0) target = $region21
    $region20: #{tpu_custom_call.1} parent=1 // pred_region
      _
    $region21: #{tpu_custom_call.1} parent=1 // pred_fallthru
      _
    // Predicated region
    $region22: #{tpu_custom_call.1} parent=1 // pred_check
      _
    $region23: #{tpu_custom_call.1} parent=1 // pred_check_branch
      %65 = sbr.rel (0) target = $region25
    $region24: #{tpu_custom_call.1} parent=1 // pred_region
      %66 = dma.done [#allocation3], 256
    $region25: #{tpu_custom_call.1} parent=1 // pred_fallthru
      _
    // Predicated region
    $region26: #{tpu_custom_call.1} parent=1 // pred_check
      _
    $region27: #{tpu_custom_call.1} parent=1 // pred_check_branch
      %68 = sbr.rel (0) target = $region29
    $region28: #{tpu_custom_call.1} parent=1 // pred_region
      %69 = dma.done [#allocation6], 256
    $region29: #{tpu_custom_call.1} parent=1 // pred_fallthru
      _
    // Predicated region
    $region30: #{tpu_custom_call.1} parent=1 // pred_check
      _
    $region31: #{tpu_custom_call.1} parent=1 // pred_check_branch
      %71 = sbr.rel (0) target = $region33
    $region32: #{tpu_custom_call.1} parent=1 // pred_region
      %72 = dma.done [#allocation6], 256
    $region33: #{tpu_custom_call.1} parent=1 // pred_fallthru
      _
    // Predicated region
    $region34: #{tpu_custom_call.1} parent=1 // pred_check
      _
    $region35: #{tpu_custom_call.1} parent=1 // pred_check_branch
      %74 = sbr.rel (0) target = $region37
    $region36: #{tpu_custom_call.1} parent=1 // pred_region
      %75 = dma.done [#allocation9], 9216
    $region37: #{tpu_custom_call.1} parent=1 // pred_fallthru
      _
    %v77 = vld [vmem:[#allocation2] sm:$0xf]
    %v78 = vld [vmem:[#allocation2 + $0x4] sm:$0xf]
    %v79 = vld [vmem:[#allocation2 + $0x8] sm:$0xf]
    %v80 = vld [vmem:[#allocation2 + $0xc] sm:$0xf]
    %v81 = vld [vmem:[#allocation5] sm:$0xf]
    %v82 = vld [vmem:[#allocation5 + $0x4] sm:$0xf]
    %v83 = vld [vmem:[#allocation5 + $0x8] sm:$0xf]
    %v84 = vld [vmem:[#allocation5 + $0xc] sm:$0xf]
    %v85 = vld [vmem:[#allocation7] sm:$0xf]
    %v86 = vld [vmem:[#allocation7 + $0x4] sm:$0xf]
    %v87 = vld [vmem:[#allocation7 + $0x8] sm:$0xf]
    %v88 = vld [vmem:[#allocation7 + $0xc] sm:$0xf]
    %v93 = vunpack.c.l.b16 %v77
    %v94 = vunpack.c.l.b16 %v78
    %v95 = vunpack.c.l.b16 %v79
    %v96 = vunpack.c.l.b16 %v80
    %v97 = vpack.c.b16 %v94, %v93
    %v98 = vpack.c.b16 %v96, %v95
    %v103 = vunpack.c.l.b16 %v85
    %v104 = vunpack.c.l.b16 %v86
    %v105 = vunpack.c.l.b16 %v87
    %v106 = vunpack.c.l.b16 %v88
    %v107 = vpack.c.b16 %v104, %v103
    %v108 = vpack.c.b16 %v106, %v105
    %vm111 = vcmask 261120
    %v113 = vsel %vm111, %v97, 0
    %v116 = vsel %vm111, %v98, 0
    %118 = vmatprep.subr.bf16.mxu0 0
    %119 = vmatpush1.bf16.msra.mxu0 %v107
    %120 = vmatprep.subr.bf16.mxu0 0
    %121 = vmatpush1.bf16.msra.mxu0 %v108
    %122 = vmatprep.subr.bf16.mxu0 0
    %123 = vmatpush1.bf16.msra.mxu0 0
    %124 = vmatprep.subr.bf16.mxu0 0
    %125 = vmatpush1.bf16.msra.mxu0 0
    %126 = vmatprep.subr.bf16.mxu0 0
    %127 = vmatpush1.bf16.msra.mxu0 0
    %128 = vmatprep.subr.bf16.mxu0 0
    %129 = vmatpush1.bf16.msra.mxu0 0
    %130 = vmatprep.subr.bf16.mxu0 0
    %131 = vmatpush1.bf16.msra.mxu0 0
    %132 = vmatprep.subr.bf16.mxu0 0
    %133 = vmatpush1.bf16.msra.mxu0 0
    %134 = vmatprep.subr.bf16.mxu0 0
    %135 = vmatpush1.bf16.msra.mxu0 0
    %136 = vmatprep.subr.bf16.mxu0 0
    %137 = vmatpush1.bf16.msra.mxu0 0
    %138 = vmatprep.subr.bf16.mxu0 0
    %139 = vmatpush1.bf16.msra.mxu0 0
    %140 = vmatprep.subr.bf16.mxu0 0
    %141 = vmatpush1.bf16.msra.mxu0 0
    %142 = vmatprep.subr.bf16.mxu0 0
    %143 = vmatpush1.bf16.msra.mxu0 0
    %144 = vmatprep.subr.bf16.mxu0 0
    %145 = vmatpush1.bf16.msra.mxu0 0
    %146 = vmatprep.subr.bf16.mxu0 0
    %147 = vmatpush1.bf16.msra.mxu0 0
    %148 = vmatprep.subr.bf16.mxu0 0
    %149 = vmatpush1.bf16.msra.mxu0 0
    %150 = vmatprep.mubr.bf16.mxu0 0
    %151 = vmatmul.mubr.bf16.gmra.mrb[0].mxu0 %v113
    %v152 = vpop.f32.mrb[0].mxu0
    %v153 = vadd.f32 0.0, %v152
    %v154 = vpop.f32.mrb[0].mxu0
    %v155 = vpop.f32.mrb[0].mxu0
    %v156 = vadd.f32 0.0, %v155
    %v157 = vpop.f32.mrb[0].mxu0
    %158 = vmatprep.mubr.bf16.mxu0 0
    %159 = vmatmul.mubr.bf16.gmra.mrb[0].mxu0 %v116
    %v160 = vpop.f32.mrb[0].mxu0
    %v161 = vadd.f32 0.0, %v160
    %v162 = vpop.f32.mrb[0].mxu0
    %v163 = vpop.f32.mrb[0].mxu0
    %v164 = vadd.f32 0.0, %v163
    %v165 = vpop.f32.mrb[0].mxu0
    %166 = vdwg.mxu0
    %v167 = vpack.c.bf16 %v156, %v153
    %v168 = vpack.c.bf16 %v164, %v161
    %v169 = vunpack.c.l.bf16 %v85
    %v170 = vunpack.c.l.bf16 %v86
    %v171 = vunpack.c.l.bf16 %v87
    %v172 = vunpack.c.l.bf16 %v88
    %v177 = vunpack.c.l.b16 %v81
    %v178 = vunpack.c.l.b16 %v82
    %v179 = vunpack.c.l.b16 %v83
    %v180 = vunpack.c.l.b16 %v84
    %v181 = vpack.c.b16 %v178, %v177
    %v182 = vpack.c.b16 %v180, %v179
    %v184 = vsel %vm111, %v181, 0
    %v187 = vsel %vm111, %v182, 0
    %189 = vmatprep.subr.bf16.mxu0 0
    %190 = vmatpush1.bf16.msra.mxu0 %v167
    %191 = vmatprep.subr.bf16.mxu0 0
    %192 = vmatpush1.bf16.msra.mxu0 %v168
    %193 = vmatprep.subr.bf16.mxu0 0
    %194 = vmatpush1.bf16.msra.mxu0 0
    %195 = vmatprep.subr.bf16.mxu0 0
    %196 = vmatpush1.bf16.msra.mxu0 0
    %197 = vmatprep.subr.bf16.mxu0 0
    %198 = vmatpush1.bf16.msra.mxu0 0
    %199 = vmatprep.subr.bf16.mxu0 0
    %200 = vmatpush1.bf16.msra.mxu0 0
    %201 = vmatprep.subr.bf16.mxu0 0
    %202 = vmatpush1.bf16.msra.mxu0 0
    %203 = vmatprep.subr.bf16.mxu0 0
    %204 = vmatpush1.bf16.msra.mxu0 0
    %205 = vmatprep.subr.bf16.mxu0 0
    %206 = vmatpush1.bf16.msra.mxu0 0
    %207 = vmatprep.subr.bf16.mxu0 0
    %208 = vmatpush1.bf16.msra.mxu0 0
    %209 = vmatprep.subr.bf16.mxu0 0
    %210 = vmatpush1.bf16.msra.mxu0 0
    %211 = vmatprep.subr.bf16.mxu0 0
    %212 = vmatpush1.bf16.msra.mxu0 0
    %213 = vmatprep.subr.bf16.mxu0 0
    %214 = vmatpush1.bf16.msra.mxu0 0
    %215 = vmatprep.subr.bf16.mxu0 0
    %216 = vmatpush1.bf16.msra.mxu0 0
    %217 = vmatprep.subr.bf16.mxu0 0
    %218 = vmatpush1.bf16.msra.mxu0 0
    %219 = vmatprep.subr.bf16.mxu0 0
    %220 = vmatpush1.bf16.msra.mxu0 0
    %221 = vmatprep.mubr.bf16.mxu0 0
    %222 = vmatmul.mubr.bf16.gmra.mrb[0].mxu0 %v184
    %v223 = vpop.f32.mrb[0].mxu0
    %v224 = vadd.f32 0.0, %v223
    %v225 = vpop.f32.mrb[0].mxu0
    %v226 = vpop.f32.mrb[0].mxu0
    %v227 = vadd.f32 0.0, %v226
    %v228 = vpop.f32.mrb[0].mxu0
    %229 = vmatprep.mubr.bf16.mxu0 0
    %230 = vmatmul.mubr.bf16.gmra.mrb[0].mxu0 %v187
    %v231 = vpop.f32.mrb[0].mxu0
    %v232 = vadd.f32 0.0, %v231
    %v233 = vpop.f32.mrb[0].mxu0
    %v234 = vpop.f32.mrb[0].mxu0
    %v235 = vadd.f32 0.0, %v234
    %v236 = vpop.f32.mrb[0].mxu0
    %237 = vdwg.mxu0
    %v238 = vsub.f32 %v224, %v169
    %v239 = vsub.f32 %v227, %v170
    %v240 = vsub.f32 %v232, %v171
    %v241 = vsub.f32 %v235, %v172
    %v242 = vpack.c.bf16 %v239, %v238
    %v243 = vpack.c.bf16 %v241, %v240
    %v244 = vld [vmem:[#allocation8] sm:$0xf]
    %v245 = vld [vmem:[#allocation8 + $0x4] sm:$0xf]
    %v246 = vld [vmem:[#allocation8 + $0x8] sm:$0xf]
    %v247 = vld [vmem:[#allocation8 + $0xc] sm:$0xf]
    %v248 = vld [vmem:[#allocation8 + $0x10] sm:$0xf]
    %v249 = vld [vmem:[#allocation8 + $0x14] sm:$0xf]
    %v250 = vld [vmem:[#allocation8 + $0x18] sm:$0xf]
    %v251 = vld [vmem:[#allocation8 + $0x1c] sm:$0xf]
    %v252 = vld [vmem:[#allocation8 + $0x20] sm:$0xf]
    %v253 = vld [vmem:[#allocation8 + $0x24] sm:$0xf]
    %v254 = vld [vmem:[#allocation8 + $0x28] sm:$0xf]
    %v255 = vld [vmem:[#allocation8 + $0x2c] sm:$0xf]
    %v256 = vld [vmem:[#allocation8 + $0x30] sm:$0xf]
    %v257 = vld [vmem:[#allocation8 + $0x34] sm:$0xf]
    %v258 = vld [vmem:[#allocation8 + $0x38] sm:$0xf]
    %v259 = vld [vmem:[#allocation8 + $0x3c] sm:$0xf]
    %v260 = vld [vmem:[#allocation8 + $0x40] sm:$0xf]
    %v261 = vld [vmem:[#allocation8 + $0x44] sm:$0xf]
    %v262 = vld [vmem:[#allocation8 + $0x48] sm:$0xf]
    %v263 = vld [vmem:[#allocation8 + $0x4c] sm:$0xf]
    %v264 = vld [vmem:[#allocation8 + $0x50] sm:$0xf]
    %v265 = vld [vmem:[#allocation8 + $0x54] sm:$0xf]
    %v266 = vld [vmem:[#allocation8 + $0x58] sm:$0xf]
    %v267 = vld [vmem:[#allocation8 + $0x5c] sm:$0xf]
    %v268 = vld [vmem:[#allocation8 + $0x60] sm:$0xf]
    %v269 = vld [vmem:[#allocation8 + $0x64] sm:$0xf]
    %v270 = vld [vmem:[#allocation8 + $0x68] sm:$0xf]
    %v271 = vld [vmem:[#allocation8 + $0x6c] sm:$0xf]
    %v272 = vld [vmem:[#allocation8 + $0x70] sm:$0xf]
    %v273 = vld [vmem:[#allocation8 + $0x74] sm:$0xf]
    %v274 = vld [vmem:[#allocation8 + $0x78] sm:$0xf]
    %v275 = vld [vmem:[#allocation8 + $0x7c] sm:$0xf]
    %v276 = vld [vmem:[#allocation8 + $0x80] sm:$0xf]
    %v277 = vld [vmem:[#allocation8 + $0x84] sm:$0xf]
    %v278 = vld [vmem:[#allocation8 + $0x88] sm:$0xf]
    %v279 = vld [vmem:[#allocation8 + $0x8c] sm:$0xf]
    %v280 = vld [vmem:[#allocation8 + $0x90] sm:$0xf]
    %v281 = vld [vmem:[#allocation8 + $0x94] sm:$0xf]
    %v282 = vld [vmem:[#allocation8 + $0x98] sm:$0xf]
    %v283 = vld [vmem:[#allocation8 + $0x9c] sm:$0xf]
    %v284 = vld [vmem:[#allocation8 + $0xa0] sm:$0xf]
    %v285 = vld [vmem:[#allocation8 + $0xa4] sm:$0xf]
    %v286 = vld [vmem:[#allocation8 + $0xa8] sm:$0xf]
    %v287 = vld [vmem:[#allocation8 + $0xac] sm:$0xf]
    %v288 = vld [vmem:[#allocation8 + $0xb0] sm:$0xf]
    %v289 = vld [vmem:[#allocation8 + $0xb4] sm:$0xf]
    %v290 = vld [vmem:[#allocation8 + $0xb8] sm:$0xf]
    %v291 = vld [vmem:[#allocation8 + $0xbc] sm:$0xf]
    %v292 = vld [vmem:[%s4] sm:$0x1]
    %v294 = vlaneseq
    %v295 = vshrl.u32 %v294, 7
    %v296 = vsub.s32 0, %v295
    %v297 = vrot.slane %v292, %v296
    %v347 = vunpack.c.l.b16 %v244
    %v348 = vunpack.c.l.b16 %v245
    %v349 = vunpack.c.l.b16 %v246
    %v350 = vunpack.c.l.b16 %v247
    %v351 = vunpack.c.l.b16 %v248
    %v352 = vunpack.c.l.b16 %v249
    %v353 = vunpack.c.l.b16 %v250
    %v354 = vunpack.c.l.b16 %v251
    %v355 = vunpack.c.l.b16 %v252
    %v356 = vunpack.c.l.b16 %v253
    %v357 = vunpack.c.l.b16 %v254
    %v358 = vunpack.c.l.b16 %v255
    %v359 = vunpack.c.l.b16 %v256
    %v360 = vunpack.c.l.b16 %v257
    %v361 = vunpack.c.l.b16 %v258
    %v362 = vunpack.c.l.b16 %v259
    %v363 = vunpack.c.l.b16 %v260
    %v364 = vunpack.c.l.b16 %v261
    %v365 = vunpack.c.l.b16 %v262
    %v366 = vunpack.c.l.b16 %v263
    %v367 = vunpack.c.l.b16 %v264
    %v368 = vunpack.c.l.b16 %v265
    %v369 = vunpack.c.l.b16 %v266
    %v370 = vunpack.c.l.b16 %v267
    %v371 = vunpack.c.l.b16 %v268
    %v372 = vunpack.c.l.b16 %v269
    %v373 = vunpack.c.l.b16 %v270
    %v374 = vunpack.c.l.b16 %v271
    %v375 = vunpack.c.l.b16 %v272
    %v376 = vunpack.c.l.b16 %v273
    %v377 = vunpack.c.l.b16 %v274
    %v378 = vunpack.c.l.b16 %v275
    %v379 = vunpack.c.l.b16 %v276
    %v380 = vunpack.c.l.b16 %v277
    %v381 = vunpack.c.l.b16 %v278
    %v382 = vunpack.c.l.b16 %v279
    %v383 = vunpack.c.l.b16 %v280
    %v384 = vunpack.c.l.b16 %v281
    %v385 = vunpack.c.l.b16 %v282
    %v386 = vunpack.c.l.b16 %v283
    %v387 = vunpack.c.l.b16 %v284
    %v388 = vunpack.c.l.b16 %v285
    %v389 = vunpack.c.l.b16 %v286
    %v390 = vunpack.c.l.b16 %v287
    %v391 = vunpack.c.l.b16 %v288
    %v392 = vunpack.c.l.b16 %v289
    %v393 = vunpack.c.l.b16 %v290
    %v394 = vunpack.c.l.b16 %v291
    %v395 = vpack.c.b16 %v348, %v347
    %v396 = vpack.c.b16 %v350, %v349
    %v397 = vpack.c.b16 %v352, %v351
    %v398 = vpack.c.b16 %v354, %v353
    %v399 = vpack.c.b16 %v356, %v355
    %v400 = vpack.c.b16 %v358, %v357
    %v401 = vpack.c.b16 %v360, %v359
    %v402 = vpack.c.b16 %v362, %v361
    %v403 = vpack.c.b16 %v364, %v363
    %v404 = vpack.c.b16 %v366, %v365
    %v405 = vpack.c.b16 %v368, %v367
    %v406 = vpack.c.b16 %v370, %v369
    %v407 = vpack.c.b16 %v372, %v371
    %v408 = vpack.c.b16 %v374, %v373
    %v409 = vpack.c.b16 %v376, %v375
    %v410 = vpack.c.b16 %v378, %v377
    %v411 = vpack.c.b16 %v380, %v379
    %v412 = vpack.c.b16 %v382, %v381
    %v413 = vpack.c.b16 %v384, %v383
    %v414 = vpack.c.b16 %v386, %v385
    %v415 = vpack.c.b16 %v388, %v387
    %v416 = vpack.c.b16 %v390, %v389
    %v417 = vpack.c.b16 %v392, %v391
    %v418 = vpack.c.b16 %v394, %v393
    %443 = vmatprep.subr.bf16.mxu0 0
    %444 = vmatpush1.bf16.msra.mxu0 %v395
    %445 = vmatprep.subr.bf16.mxu0 0
    %446 = vmatpush1.bf16.msra.mxu0 %v396
    %447 = vmatprep.subr.bf16.mxu0 0
    %448 = vmatpush1.bf16.msra.mxu0 %v397
    %449 = vmatprep.subr.bf16.mxu0 0
    %450 = vmatpush1.bf16.msra.mxu0 %v398
    %451 = vmatprep.subr.bf16.mxu0 0
    %452 = vmatpush1.bf16.msra.mxu0 %v399
    %453 = vmatprep.subr.bf16.mxu0 0
    %454 = vmatpush1.bf16.msra.mxu0 %v400
    %455 = vmatprep.subr.bf16.mxu0 0
    %456 = vmatpush1.bf16.msra.mxu0 %v401
    %457 = vmatprep.subr.bf16.mxu0 0
    %458 = vmatpush1.bf16.msra.mxu0 %v402
    %459 = vmatprep.subr.bf16.mxu0 0
    %460 = vmatpush1.bf16.msra.mxu0 %v403
    %461 = vmatprep.subr.bf16.mxu0 0
    %462 = vmatpush1.bf16.msra.mxu0 %v404
    %463 = vmatprep.subr.bf16.mxu0 0
    %464 = vmatpush1.bf16.msra.mxu0 %v405
    %465 = vmatprep.subr.bf16.mxu0 0
    %466 = vmatpush1.bf16.msra.mxu0 %v406
    %467 = vmatprep.subr.bf16.mxu0 0
    %468 = vmatpush1.bf16.msra.mxu0 %v407
    %469 = vmatprep.subr.bf16.mxu0 0
    %470 = vmatpush1.bf16.msra.mxu0 %v408
    %471 = vmatprep.subr.bf16.mxu0 0
    %472 = vmatpush1.bf16.msra.mxu0 %v409
    %473 = vmatprep.subr.bf16.mxu0 0
    %474 = vmatpush1.bf16.msra.mxu0 %v410
    %475 = vmatprep.mubr.bf16.mxu0 %v167
    %476 = vmatmul.mubr.bf16.gmra.mrb[0].mxu0 %v107
    %v477 = vpop.f32.mrb[0].mxu0
    %v478 = vadd.f32 %v297, %v477
    %v479 = vpop.f32.mrb[0].mxu0
    %v480 = vpop.f32.mrb[0].mxu0
    %v481 = vadd.f32 %v297, %v480
    %v482 = vpop.f32.mrb[0].mxu0
    %483 = vmatprep.mubr.bf16.mxu0 %v168
    %484 = vmatmul.mubr.bf16.gmra.mrb[0].mxu0 %v108
    %v485 = vpop.f32.mrb[0].mxu0
    %v486 = vadd.f32 %v297, %v485
    %v487 = vpop.f32.mrb[0].mxu0
    %v488 = vpop.f32.mrb[0].mxu0
    %v489 = vadd.f32 %v297, %v488
    %v490 = vpop.f32.mrb[0].mxu0
    %491 = vdwg.mxu0
    %492 = vmatprep.subr.bf16.mxu0 0
    %493 = vmatpush1.bf16.msra.mxu0 %v411
    %494 = vmatprep.subr.bf16.mxu0 0
    %495 = vmatpush1.bf16.msra.mxu0 %v412
    %496 = vmatprep.subr.bf16.mxu0 0
    %497 = vmatpush1.bf16.msra.mxu0 %v413
    %498 = vmatprep.subr.bf16.mxu0 0
    %499 = vmatpush1.bf16.msra.mxu0 %v414
    %500 = vmatprep.subr.bf16.mxu0 0
    %501 = vmatpush1.bf16.msra.mxu0 %v415
    %502 = vmatprep.subr.bf16.mxu0 0
    %503 = vmatpush1.bf16.msra.mxu0 %v416
    %504 = vmatprep.subr.bf16.mxu0 0
    %505 = vmatpush1.bf16.msra.mxu0 %v417
    %506 = vmatprep.subr.bf16.mxu0 0
    %507 = vmatpush1.bf16.msra.mxu0 %v418
    %508 = vmatprep.subr.bf16.mxu0 0
    %509 = vmatpush1.bf16.msra.mxu0 0
    %510 = vmatprep.subr.bf16.mxu0 0
    %511 = vmatpush1.bf16.msra.mxu0 0
    %512 = vmatprep.subr.bf16.mxu0 0
    %513 = vmatpush1.bf16.msra.mxu0 0
    %514 = vmatprep.subr.bf16.mxu0 0
    %515 = vmatpush1.bf16.msra.mxu0 0
    %516 = vmatprep.subr.bf16.mxu0 0
    %517 = vmatpush1.bf16.msra.mxu0 0
    %518 = vmatprep.subr.bf16.mxu0 0
    %519 = vmatpush1.bf16.msra.mxu0 0
    %520 = vmatprep.subr.bf16.mxu0 0
    %521 = vmatpush1.bf16.msra.mxu0 0
    %522 = vmatprep.subr.bf16.mxu0 0
    %523 = vmatpush1.bf16.msra.mxu0 0
    %524 = vmatprep.mubr.bf16.mxu0 0
    %525 = vmatmul.mubr.bf16.gmra.mrb[0].mxu0 %v242
    %v526 = vpop.f32.mrb[0].mxu0
    %v527 = vadd.f32 %v478, %v526
    %v528 = vpop.f32.mrb[0].mxu0
    %v529 = vpop.f32.mrb[0].mxu0
    %v530 = vadd.f32 %v481, %v529
    %v531 = vpop.f32.mrb[0].mxu0
    %532 = vmatprep.mubr.bf16.mxu0 0
    %533 = vmatmul.mubr.bf16.gmra.mrb[0].mxu0 %v243
    %v534 = vpop.f32.mrb[0].mxu0
    %v535 = vadd.f32 %v486, %v534
    %v536 = vpop.f32.mrb[0].mxu0
    %v537 = vpop.f32.mrb[0].mxu0
    %v538 = vadd.f32 %v489, %v537
    %v539 = vpop.f32.mrb[0].mxu0
    %540 = vdwg.mxu0
    %v541 = vmax.f32 %v527, 0.0
    %v542 = vmax.f32 %v530, 0.0
    %v543 = vmax.f32 %v535, 0.0
    %v544 = vmax.f32 %v538, 0.0
    %v545 = vpack.c.bf16 %v542, %v541
    %v546 = vpack.c.bf16 %v544, %v543
    %547 = vmatprep.subr.bf16.mxu0 0
    %548 = vmatpush1.bf16.msra.mxu0 %v545
    %549 = vmatprep.subr.bf16.mxu0 0
    %550 = vmatpush1.bf16.msra.mxu0 %v546
    %551 = vmatprep.subr.bf16.mxu0 0
    %552 = vmatpush1.bf16.msra.mxu0 0
    %553 = vmatprep.subr.bf16.mxu0 0
    %554 = vmatpush1.bf16.msra.mxu0 0
    %555 = vmatprep.subr.bf16.mxu0 0
    %556 = vmatpush1.bf16.msra.mxu0 0
    %557 = vmatprep.subr.bf16.mxu0 0
    %558 = vmatpush1.bf16.msra.mxu0 0
    %559 = vmatprep.subr.bf16.mxu0 0
    %560 = vmatpush1.bf16.msra.mxu0 0
    %561 = vmatprep.subr.bf16.mxu0 0
    %562 = vmatpush1.bf16.msra.mxu0 0
    %563 = vmatprep.subr.bf16.mxu0 0
    %564 = vmatpush1.bf16.msra.mxu0 0
    %565 = vmatprep.subr.bf16.mxu0 0
    %566 = vmatpush1.bf16.msra.mxu0 0
    %567 = vmatprep.subr.bf16.mxu0 0
    %568 = vmatpush1.bf16.msra.mxu0 0
    %569 = vmatprep.subr.bf16.mxu0 0
    %570 = vmatpush1.bf16.msra.mxu0 0
    %571 = vmatprep.subr.bf16.mxu0 0
    %572 = vmatpush1.bf16.msra.mxu0 0
    %573 = vmatprep.subr.bf16.mxu0 0
    %574 = vmatpush1.bf16.msra.mxu0 0
    %575 = vmatprep.subr.bf16.mxu0 0
    %576 = vmatpush1.bf16.msra.mxu0 0
    %577 = vmatprep.subr.bf16.mxu0 0
    %578 = vmatpush1.bf16.msra.mxu0 0
    %579 = vmatprep.mubr.bf16.mxu0 0
    %580 = vmatmul.mubr.bf16.gmra.mrb[0].mxu0 %v113
    %v581 = vpop.f32.mrb[0].mxu0
    %v582 = vadd.f32 0.0, %v581
    %v583 = vpop.f32.mrb[0].mxu0
    %v584 = vpop.f32.mrb[0].mxu0
    %v585 = vadd.f32 0.0, %v584
    %v586 = vpop.f32.mrb[0].mxu0
    %587 = vmatprep.mubr.bf16.mxu0 0
    %588 = vmatmul.mubr.bf16.gmra.mrb[0].mxu0 %v116
    %v589 = vpop.f32.mrb[0].mxu0
    %v590 = vadd.f32 0.0, %v589
    %v591 = vpop.f32.mrb[0].mxu0
    %v592 = vpop.f32.mrb[0].mxu0
    %v593 = vadd.f32 0.0, %v592
    %v594 = vpop.f32.mrb[0].mxu0
    %595 = vdwg.mxu0
    %v596 = vpack.c.bf16 %v585, %v582
    %v597 = vpack.c.bf16 %v593, %v590
    %v598 = vunpack.c.l.bf16 %v545
    %v599 = vunpack.c.h.bf16 %v545
    %v600 = vunpack.c.l.bf16 %v546
    %v601 = vunpack.c.h.bf16 %v546
    %602 = vmatprep.subr.bf16.mxu0 0
    %603 = vmatpush1.bf16.msra.mxu0 %v596
    %604 = vmatprep.subr.bf16.mxu0 0
    %605 = vmatpush1.bf16.msra.mxu0 %v597
    %606 = vmatprep.subr.bf16.mxu0 0
    %607 = vmatpush1.bf16.msra.mxu0 0
    %608 = vmatprep.subr.bf16.mxu0 0
    %609 = vmatpush1.bf16.msra.mxu0 0
    %610 = vmatprep.subr.bf16.mxu0 0
    %611 = vmatpush1.bf16.msra.mxu0 0
    %612 = vmatprep.subr.bf16.mxu0 0
    %613 = vmatpush1.bf16.msra.mxu0 0
    %614 = vmatprep.subr.bf16.mxu0 0
    %615 = vmatpush1.bf16.msra.mxu0 0
    %616 = vmatprep.subr.bf16.mxu0 0
    %617 = vmatpush1.bf16.msra.mxu0 0
    %618 = vmatprep.subr.bf16.mxu0 0
    %619 = vmatpush1.bf16.msra.mxu0 0
    %620 = vmatprep.subr.bf16.mxu0 0
    %621 = vmatpush1.bf16.msra.mxu0 0
    %622 = vmatprep.subr.bf16.mxu0 0
    %623 = vmatpush1.bf16.msra.mxu0 0
    %624 = vmatprep.subr.bf16.mxu0 0
    %625 = vmatpush1.bf16.msra.mxu0 0
    %626 = vmatprep.subr.bf16.mxu0 0
    %627 = vmatpush1.bf16.msra.mxu0 0
    %628 = vmatprep.subr.bf16.mxu0 0
    %629 = vmatpush1.bf16.msra.mxu0 0
    %630 = vmatprep.subr.bf16.mxu0 0
    %631 = vmatpush1.bf16.msra.mxu0 0
    %632 = vmatprep.subr.bf16.mxu0 0
    %633 = vmatpush1.bf16.msra.mxu0 0
    %634 = vmatprep.mubr.bf16.mxu0 0
    %635 = vmatmul.mubr.bf16.gmra.mrb[0].mxu0 %v184
    %v636 = vpop.f32.mrb[0].mxu0
    %v637 = vadd.f32 0.0, %v636
    %v638 = vpop.f32.mrb[0].mxu0
    %v639 = vpop.f32.mrb[0].mxu0
    %v640 = vadd.f32 0.0, %v639
    %v641 = vpop.f32.mrb[0].mxu0
    %642 = vmatprep.mubr.bf16.mxu0 0
    %643 = vmatmul.mubr.bf16.gmra.mrb[0].mxu0 %v187
    %v644 = vpop.f32.mrb[0].mxu0
    %v645 = vadd.f32 0.0, %v644
    %v646 = vpop.f32.mrb[0].mxu0
    %v647 = vpop.f32.mrb[0].mxu0
    %v648 = vadd.f32 0.0, %v647
    %v649 = vpop.f32.mrb[0].mxu0
    %650 = vdwg.mxu0
    %v651 = vsub.f32 %v637, %v598
    %v652 = vsub.f32 %v640, %v599
    %v653 = vsub.f32 %v645, %v600
    %v654 = vsub.f32 %v648, %v601
    %v655 = vpack.c.bf16 %v652, %v651
    %v656 = vpack.c.bf16 %v654, %v653
    %s657 = scalar_lea.vmem [#allocation8], 192
    %v658 = vld [vmem:[%s657] sm:$0xf]
    %v659 = vld [vmem:[%s657 + $0x4] sm:$0xf]
    %v660 = vld [vmem:[%s657 + $0x8] sm:$0xf]
    %v661 = vld [vmem:[%s657 + $0xc] sm:$0xf]
    %v662 = vld [vmem:[%s657 + $0x10] sm:$0xf]
    %v663 = vld [vmem:[%s657 + $0x14] sm:$0xf]
    %v664 = vld [vmem:[%s657 + $0x18] sm:$0xf]
    %v665 = vld [vmem:[%s657 + $0x1c] sm:$0xf]
    %v666 = vld [vmem:[%s657 + $0x20] sm:$0xf]
    %v667 = vld [vmem:[%s657 + $0x24] sm:$0xf]
    %v668 = vld [vmem:[%s657 + $0x28] sm:$0xf]
    %v669 = vld [vmem:[%s657 + $0x2c] sm:$0xf]
    %v670 = vld [vmem:[%s657 + $0x30] sm:$0xf]
    %v671 = vld [vmem:[%s657 + $0x34] sm:$0xf]
    %v672 = vld [vmem:[%s657 + $0x38] sm:$0xf]
    %v673 = vld [vmem:[%s657 + $0x3c] sm:$0xf]
    %v674 = vld [vmem:[%s657 + $0x40] sm:$0xf]
    %v675 = vld [vmem:[%s657 + $0x44] sm:$0xf]
    %v676 = vld [vmem:[%s657 + $0x48] sm:$0xf]
    %v677 = vld [vmem:[%s657 + $0x4c] sm:$0xf]
    %v678 = vld [vmem:[%s657 + $0x50] sm:$0xf]
    %v679 = vld [vmem:[%s657 + $0x54] sm:$0xf]
    %v680 = vld [vmem:[%s657 + $0x58] sm:$0xf]
    %v681 = vld [vmem:[%s657 + $0x5c] sm:$0xf]
    %v682 = vld [vmem:[%s657 + $0x60] sm:$0xf]
    %v683 = vld [vmem:[%s657 + $0x64] sm:$0xf]
    %v684 = vld [vmem:[%s657 + $0x68] sm:$0xf]
    %v685 = vld [vmem:[%s657 + $0x6c] sm:$0xf]
    %v686 = vld [vmem:[%s657 + $0x70] sm:$0xf]
    %v687 = vld [vmem:[%s657 + $0x74] sm:$0xf]
    %v688 = vld [vmem:[%s657 + $0x78] sm:$0xf]
    %v689 = vld [vmem:[%s657 + $0x7c] sm:$0xf]
    %v690 = vld [vmem:[%s657 + $0x80] sm:$0xf]
    %v691 = vld [vmem:[%s657 + $0x84] sm:$0xf]
    %v692 = vld [vmem:[%s657 + $0x88] sm:$0xf]
    %v693 = vld [vmem:[%s657 + $0x8c] sm:$0xf]
    %v694 = vld [vmem:[%s657 + $0x90] sm:$0xf]
    %v695 = vld [vmem:[%s657 + $0x94] sm:$0xf]
    %v696 = vld [vmem:[%s657 + $0x98] sm:$0xf]
    %v697 = vld [vmem:[%s657 + $0x9c] sm:$0xf]
    %v698 = vld [vmem:[%s657 + $0xa0] sm:$0xf]
    %v699 = vld [vmem:[%s657 + $0xa4] sm:$0xf]
    %v700 = vld [vmem:[%s657 + $0xa8] sm:$0xf]
    %v701 = vld [vmem:[%s657 + $0xac] sm:$0xf]
    %v702 = vld [vmem:[%s657 + $0xb0] sm:$0xf]
    %v703 = vld [vmem:[%s657 + $0xb4] sm:$0xf]
    %v704 = vld [vmem:[%s657 + $0xb8] sm:$0xf]
    %v705 = vld [vmem:[%s657 + $0xbc] sm:$0xf]
    %s706 = scalar_lea.vmem %s4, 1
    %v707 = vld [vmem:[%s706] sm:$0x1]
    %v709 = vlaneseq
    %v710 = vshrl.u32 %v709, 7
    %v711 = vsub.s32 0, %v710
    %v712 = vrot.slane %v707, %v711
    %v762 = vunpack.c.l.b16 %v658
    %v763 = vunpack.c.l.b16 %v659
    %v764 = vunpack.c.l.b16 %v660
    %v765 = vunpack.c.l.b16 %v661
    %v766 = vunpack.c.l.b16 %v662
    %v767 = vunpack.c.l.b16 %v663
    %v768 = vunpack.c.l.b16 %v664
    %v769 = vunpack.c.l.b16 %v665
    %v770 = vunpack.c.l.b16 %v666
    %v771 = vunpack.c.l.b16 %v667
    %v772 = vunpack.c.l.b16 %v668
    %v773 = vunpack.c.l.b16 %v669
    %v774 = vunpack.c.l.b16 %v670
    %v775 = vunpack.c.l.b16 %v671
    %v776 = vunpack.c.l.b16 %v672
    %v777 = vunpack.c.l.b16 %v673
    %v778 = vunpack.c.l.b16 %v674
    %v779 = vunpack.c.l.b16 %v675
    %v780 = vunpack.c.l.b16 %v676
    %v781 = vunpack.c.l.b16 %v677
    %v782 = vunpack.c.l.b16 %v678
    %v783 = vunpack.c.l.b16 %v679
    %v784 = vunpack.c.l.b16 %v680
    %v785 = vunpack.c.l.b16 %v681
    %v786 = vunpack.c.l.b16 %v682
    %v787 = vunpack.c.l.b16 %v683
    %v788 = vunpack.c.l.b16 %v684
    %v789 = vunpack.c.l.b16 %v685
    %v790 = vunpack.c.l.b16 %v686
    %v791 = vunpack.c.l.b16 %v687
    %v792 = vunpack.c.l.b16 %v688
    %v793 = vunpack.c.l.b16 %v689
    %v794 = vunpack.c.l.b16 %v690
    %v795 = vunpack.c.l.b16 %v691
    %v796 = vunpack.c.l.b16 %v692
    %v797 = vunpack.c.l.b16 %v693
    %v798 = vunpack.c.l.b16 %v694
    %v799 = vunpack.c.l.b16 %v695
    %v800 = vunpack.c.l.b16 %v696
    %v801 = vunpack.c.l.b16 %v697
    %v802 = vunpack.c.l.b16 %v698
    %v803 = vunpack.c.l.b16 %v699
    %v804 = vunpack.c.l.b16 %v700
    %v805 = vunpack.c.l.b16 %v701
    %v806 = vunpack.c.l.b16 %v702
    %v807 = vunpack.c.l.b16 %v703
    %v808 = vunpack.c.l.b16 %v704
    %v809 = vunpack.c.l.b16 %v705
    %v810 = vpack.c.b16 %v763, %v762
    %v811 = vpack.c.b16 %v765, %v764
    %v812 = vpack.c.b16 %v767, %v766
    %v813 = vpack.c.b16 %v769, %v768
    %v814 = vpack.c.b16 %v771, %v770
    %v815 = vpack.c.b16 %v773, %v772
    %v816 = vpack.c.b16 %v775, %v774
    %v817 = vpack.c.b16 %v777, %v776
    %v818 = vpack.c.b16 %v779, %v778
    %v819 = vpack.c.b16 %v781, %v780
    %v820 = vpack.c.b16 %v783, %v782
    %v821 = vpack.c.b16 %v785, %v784
    %v822 = vpack.c.b16 %v787, %v786
    %v823 = vpack.c.b16 %v789, %v788
    %v824 = vpack.c.b16 %v791, %v790
    %v825 = vpack.c.b16 %v793, %v792
    %v826 = vpack.c.b16 %v795, %v794
    %v827 = vpack.c.b16 %v797, %v796
    %v828 = vpack.c.b16 %v799, %v798
    %v829 = vpack.c.b16 %v801, %v800
    %v830 = vpack.c.b16 %v803, %v802
    %v831 = vpack.c.b16 %v805, %v804
    %v832 = vpack.c.b16 %v807, %v806
    %v833 = vpack.c.b16 %v809, %v808
    %858 = vmatprep.subr.bf16.mxu0 0
    %859 = vmatpush1.bf16.msra.mxu0 %v810
    %860 = vmatprep.subr.bf16.mxu0 0
    %861 = vmatpush1.bf16.msra.mxu0 %v811
    %862 = vmatprep.subr.bf16.mxu0 0
    %863 = vmatpush1.bf16.msra.mxu0 %v812
    %864 = vmatprep.subr.bf16.mxu0 0
    %865 = vmatpush1.bf16.msra.mxu0 %v813
    %866 = vmatprep.subr.bf16.mxu0 0
    %867 = vmatpush1.bf16.msra.mxu0 %v814
    %868 = vmatprep.subr.bf16.mxu0 0
    %869 = vmatpush1.bf16.msra.mxu0 %v815
    %870 = vmatprep.subr.bf16.mxu0 0
    %871 = vmatpush1.bf16.msra.mxu0 %v816
    %872 = vmatprep.subr.bf16.mxu0 0
    %873 = vmatpush1.bf16.msra.mxu0 %v817
    %874 = vmatprep.subr.bf16.mxu0 0
    %875 = vmatpush1.bf16.msra.mxu0 %v818
    %876 = vmatprep.subr.bf16.mxu0 0
    %877 = vmatpush1.bf16.msra.mxu0 %v819
    %878 = vmatprep.subr.bf16.mxu0 0
    %879 = vmatpush1.bf16.msra.mxu0 %v820
    %880 = vmatprep.subr.bf16.mxu0 0
    %881 = vmatpush1.bf16.msra.mxu0 %v821
    %882 = vmatprep.subr.bf16.mxu0 0
    %883 = vmatpush1.bf16.msra.mxu0 %v822
    %884 = vmatprep.subr.bf16.mxu0 0
    %885 = vmatpush1.bf16.msra.mxu0 %v823
    %886 = vmatprep.subr.bf16.mxu0 0
    %887 = vmatpush1.bf16.msra.mxu0 %v824
    %888 = vmatprep.subr.bf16.mxu0 0
    %889 = vmatpush1.bf16.msra.mxu0 %v825
    %890 = vmatprep.mubr.bf16.mxu0 %v596
    %891 = vmatmul.mubr.bf16.gmra.mrb[0].mxu0 %v545
    %v892 = vpop.f32.mrb[0].mxu0
    %v893 = vadd.f32 %v712, %v892
    %v894 = vpop.f32.mrb[0].mxu0
    %v895 = vpop.f32.mrb[0].mxu0
    %v896 = vadd.f32 %v712, %v895
    %v897 = vpop.f32.mrb[0].mxu0
    %898 = vmatprep.mubr.bf16.mxu0 %v597
    %899 = vmatmul.mubr.bf16.gmra.mrb[0].mxu0 %v546
    %v900 = vpop.f32.mrb[0].mxu0
    %v901 = vadd.f32 %v712, %v900
    %v902 = vpop.f32.mrb[0].mxu0
    %v903 = vpop.f32.mrb[0].mxu0
    %v904 = vadd.f32 %v712, %v903
    %v905 = vpop.f32.mrb[0].mxu0
    %906 = vdwg.mxu0
    %907 = vmatprep.subr.bf16.mxu0 0
    %908 = vmatpush1.bf16.msra.mxu0 %v826
    %909 = vmatprep.subr.bf16.mxu0 0
    %910 = vmatpush1.bf16.msra.mxu0 %v827
    %911 = vmatprep.subr.bf16.mxu0 0
    %912 = vmatpush1.bf16.msra.mxu0 %v828
    %913 = vmatprep.subr.bf16.mxu0 0
    %914 = vmatpush1.bf16.msra.mxu0 %v829
    %915 = vmatprep.subr.bf16.mxu0 0
    %916 = vmatpush1.bf16.msra.mxu0 %v830
    %917 = vmatprep.subr.bf16.mxu0 0
    %918 = vmatpush1.bf16.msra.mxu0 %v831
    %919 = vmatprep.subr.bf16.mxu0 0
    %920 = vmatpush1.bf16.msra.mxu0 %v832
    %921 = vmatprep.subr.bf16.mxu0 0
    %922 = vmatpush1.bf16.msra.mxu0 %v833
    %923 = vmatprep.subr.bf16.mxu0 0
    %924 = vmatpush1.bf16.msra.mxu0 0
    %925 = vmatprep.subr.bf16.mxu0 0
    %926 = vmatpush1.bf16.msra.mxu0 0
    %927 = vmatprep.subr.bf16.mxu0 0
    %928 = vmatpush1.bf16.msra.mxu0 0
    %929 = vmatprep.subr.bf16.mxu0 0
    %930 = vmatpush1.bf16.msra.mxu0 0
    %931 = vmatprep.subr.bf16.mxu0 0
    %932 = vmatpush1.bf16.msra.mxu0 0
    %933 = vmatprep.subr.bf16.mxu0 0
    %934 = vmatpush1.bf16.msra.mxu0 0
    %935 = vmatprep.subr.bf16.mxu0 0
    %936 = vmatpush1.bf16.msra.mxu0 0
    %937 = vmatprep.subr.bf16.mxu0 0
    %938 = vmatpush1.bf16.msra.mxu0 0
    %939 = vmatprep.mubr.bf16.mxu0 0
    %940 = vmatmul.mubr.bf16.gmra.mrb[0].mxu0 %v655
    %v941 = vpop.f32.mrb[0].mxu0
    %v942 = vadd.f32 %v893, %v941
    %v943 = vpop.f32.mrb[0].mxu0
    %v944 = vpop.f32.mrb[0].mxu0
    %v945 = vadd.f32 %v896, %v944
    %v946 = vpop.f32.mrb[0].mxu0
    %947 = vmatprep.mubr.bf16.mxu0 0
    %948 = vmatmul.mubr.bf16.gmra.mrb[0].mxu0 %v656
    %v949 = vpop.f32.mrb[0].mxu0
    %v950 = vadd.f32 %v901, %v949
    %v951 = vpop.f32.mrb[0].mxu0
    %v952 = vpop.f32.mrb[0].mxu0
    %v953 = vadd.f32 %v904, %v952
    %v954 = vpop.f32.mrb[0].mxu0
    %955 = vdwg.mxu0
    %v956 = vmax.f32 %v942, 0.0
    %v957 = vmax.f32 %v945, 0.0
    %v958 = vmax.f32 %v950, 0.0
    %v959 = vmax.f32 %v953, 0.0
    %v960 = vpack.c.bf16 %v957, %v956
    %v961 = vpack.c.bf16 %v959, %v958
    %962 = vmatprep.subr.bf16.mxu0 0
    %963 = vmatpush1.bf16.msra.mxu0 %v960
    %964 = vmatprep.subr.bf16.mxu0 0
    %965 = vmatpush1.bf16.msra.mxu0 %v961
    %966 = vmatprep.subr.bf16.mxu0 0
    %967 = vmatpush1.bf16.msra.mxu0 0
    %968 = vmatprep.subr.bf16.mxu0 0
    %969 = vmatpush1.bf16.msra.mxu0 0
    %970 = vmatprep.subr.bf16.mxu0 0
    %971 = vmatpush1.bf16.msra.mxu0 0
    %972 = vmatprep.subr.bf16.mxu0 0
    %973 = vmatpush1.bf16.msra.mxu0 0
    %974 = vmatprep.subr.bf16.mxu0 0
    %975 = vmatpush1.bf16.msra.mxu0 0
    %976 = vmatprep.subr.bf16.mxu0 0
    %977 = vmatpush1.bf16.msra.mxu0 0
    %978 = vmatprep.subr.bf16.mxu0 0
    %979 = vmatpush1.bf16.msra.mxu0 0
    %980 = vmatprep.subr.bf16.mxu0 0
    %981 = vmatpush1.bf16.msra.mxu0 0
    %982 = vmatprep.subr.bf16.mxu0 0
    %983 = vmatpush1.bf16.msra.mxu0 0
    %984 = vmatprep.subr.bf16.mxu0 0
    %985 = vmatpush1.bf16.msra.mxu0 0
    %986 = vmatprep.subr.bf16.mxu0 0
    %987 = vmatpush1.bf16.msra.mxu0 0
    %988 = vmatprep.subr.bf16.mxu0 0
    %989 = vmatpush1.bf16.msra.mxu0 0
    %990 = vmatprep.subr.bf16.mxu0 0
    %991 = vmatpush1.bf16.msra.mxu0 0
    %992 = vmatprep.subr.bf16.mxu0 0
    %993 = vmatpush1.bf16.msra.mxu0 0
    %994 = vmatprep.mubr.bf16.mxu0 0
    %995 = vmatmul.mubr.bf16.gmra.mrb[0].mxu0 %v113
    %v996 = vpop.f32.mrb[0].mxu0
    %v997 = vadd.f32 0.0, %v996
    %v998 = vpop.f32.mrb[0].mxu0
    %v999 = vpop.f32.mrb[0].mxu0
    %v1000 = vadd.f32 0.0, %v999
    %v1001 = vpop.f32.mrb[0].mxu0
    %1002 = vmatprep.mubr.bf16.mxu0 0
    %1003 = vmatmul.mubr.bf16.gmra.mrb[0].mxu0 %v116
    %v1004 = vpop.f32.mrb[0].mxu0
    %v1005 = vadd.f32 0.0, %v1004
    %v1006 = vpop.f32.mrb[0].mxu0
    %v1007 = vpop.f32.mrb[0].mxu0
    %v1008 = vadd.f32 0.0, %v1007
    %v1009 = vpop.f32.mrb[0].mxu0
    %1010 = vdwg.mxu0
    %v1011 = vpack.c.bf16 %v1000, %v997
    %v1012 = vpack.c.bf16 %v1008, %v1005
    %v1013 = vunpack.c.l.bf16 %v960
    %v1014 = vunpack.c.h.bf16 %v960
    %v1015 = vunpack.c.l.bf16 %v961
    %v1016 = vunpack.c.h.bf16 %v961
    %1017 = vmatprep.subr.bf16.mxu0 0
    %1018 = vmatpush1.bf16.msra.mxu0 %v1011
    %1019 = vmatprep.subr.bf16.mxu0 0
    %1020 = vmatpush1.bf16.msra.mxu0 %v1012
    %1021 = vmatprep.subr.bf16.mxu0 0
    %1022 = vmatpush1.bf16.msra.mxu0 0
    %1023 = vmatprep.subr.bf16.mxu0 0
    %1024 = vmatpush1.bf16.msra.mxu0 0
    %1025 = vmatprep.subr.bf16.mxu0 0
    %1026 = vmatpush1.bf16.msra.mxu0 0
    %1027 = vmatprep.subr.bf16.mxu0 0
    %1028 = vmatpush1.bf16.msra.mxu0 0
    %1029 = vmatprep.subr.bf16.mxu0 0
    %1030 = vmatpush1.bf16.msra.mxu0 0
    %1031 = vmatprep.subr.bf16.mxu0 0
    %1032 = vmatpush1.bf16.msra.mxu0 0
    %1033 = vmatprep.subr.bf16.mxu0 0
    %1034 = vmatpush1.bf16.msra.mxu0 0
    %1035 = vmatprep.subr.bf16.mxu0 0
    %1036 = vmatpush1.bf16.msra.mxu0 0
    %1037 = vmatprep.subr.bf16.mxu0 0
    %1038 = vmatpush1.bf16.msra.mxu0 0
    %1039 = vmatprep.subr.bf16.mxu0 0
    %1040 = vmatpush1.bf16.msra.mxu0 0
    %1041 = vmatprep.subr.bf16.mxu0 0
    %1042 = vmatpush1.bf16.msra.mxu0 0
    %1043 = vmatprep.subr.bf16.mxu0 0
    %1044 = vmatpush1.bf16.msra.mxu0 0
    %1045 = vmatprep.subr.bf16.mxu0 0
    %1046 = vmatpush1.bf16.msra.mxu0 0
    %1047 = vmatprep.subr.bf16.mxu0 0
    %1048 = vmatpush1.bf16.msra.mxu0 0
    %1049 = vmatprep.mubr.bf16.mxu0 0
    %1050 = vmatmul.mubr.bf16.gmra.mrb[0].mxu0 %v184
    %v1051 = vpop.f32.mrb[0].mxu0
    %v1052 = vadd.f32 0.0, %v1051
    %v1053 = vpop.f32.mrb[0].mxu0
    %v1054 = vpop.f32.mrb[0].mxu0
    %v1055 = vadd.f32 0.0, %v1054
    %v1056 = vpop.f32.mrb[0].mxu0
    %1057 = vmatprep.mubr.bf16.mxu0 0
    %1058 = vmatmul.mubr.bf16.gmra.mrb[0].mxu0 %v187
    %v1059 = vpop.f32.mrb[0].mxu0
    %v1060 = vadd.f32 0.0, %v1059
    %v1061 = vpop.f32.mrb[0].mxu0
    %v1062 = vpop.f32.mrb[0].mxu0
    %v1063 = vadd.f32 0.0, %v1062
    %v1064 = vpop.f32.mrb[0].mxu0
    %1065 = vdwg.mxu0
    %v1066 = vsub.f32 %v1052, %v1013
    %v1067 = vsub.f32 %v1055, %v1014
    %v1068 = vsub.f32 %v1060, %v1015
    %v1069 = vsub.f32 %v1063, %v1016
    %v1070 = vpack.c.bf16 %v1067, %v1066
    %v1071 = vpack.c.bf16 %v1069, %v1068
    %s1072 = scalar_lea.vmem [#allocation8], 384
    %v1073 = vld [vmem:[%s1072] sm:$0xf]
    %v1074 = vld [vmem:[%s1072 + $0x4] sm:$0xf]
    %v1075 = vld [vmem:[%s1072 + $0x8] sm:$0xf]
    %v1076 = vld [vmem:[%s1072 + $0xc] sm:$0xf]
    %v1077 = vld [vmem:[%s1072 + $0x10] sm:$0xf]
    %v1078 = vld [vmem:[%s1072 + $0x14] sm:$0xf]
    %v1079 = vld [vmem:[%s1072 + $0x18] sm:$0xf]
    %v1080 = vld [vmem:[%s1072 + $0x1c] sm:$0xf]
    %v1081 = vld [vmem:[%s1072 + $0x20] sm:$0xf]
    %v1082 = vld [vmem:[%s1072 + $0x24] sm:$0xf]
    %v1083 = vld [vmem:[%s1072 + $0x28] sm:$0xf]
    %v1084 = vld [vmem:[%s1072 + $0x2c] sm:$0xf]
    %v1085 = vld [vmem:[%s1072 + $0x30] sm:$0xf]
    %v1086 = vld [vmem:[%s1072 + $0x34] sm:$0xf]
    %v1087 = vld [vmem:[%s1072 + $0x38] sm:$0xf]
    %v1088 = vld [vmem:[%s1072 + $0x3c] sm:$0xf]
    %v1089 = vld [vmem:[%s1072 + $0x40] sm:$0xf]
    %v1090 = vld [vmem:[%s1072 + $0x44] sm:$0xf]
    %v1091 = vld [vmem:[%s1072 + $0x48] sm:$0xf]
    %v1092 = vld [vmem:[%s1072 + $0x4c] sm:$0xf]
    %v1093 = vld [vmem:[%s1072 + $0x50] sm:$0xf]
    %v1094 = vld [vmem:[%s1072 + $0x54] sm:$0xf]
    %v1095 = vld [vmem:[%s1072 + $0x58] sm:$0xf]
    %v1096 = vld [vmem:[%s1072 + $0x5c] sm:$0xf]
    %v1097 = vld [vmem:[%s1072 + $0x60] sm:$0xf]
    %v1098 = vld [vmem:[%s1072 + $0x64] sm:$0xf]
    %v1099 = vld [vmem:[%s1072 + $0x68] sm:$0xf]
    %v1100 = vld [vmem:[%s1072 + $0x6c] sm:$0xf]
    %v1101 = vld [vmem:[%s1072 + $0x70] sm:$0xf]
    %v1102 = vld [vmem:[%s1072 + $0x74] sm:$0xf]
    %v1103 = vld [vmem:[%s1072 + $0x78] sm:$0xf]
    %v1104 = vld [vmem:[%s1072 + $0x7c] sm:$0xf]
    %v1105 = vld [vmem:[%s1072 + $0x80] sm:$0xf]
    %v1106 = vld [vmem:[%s1072 + $0x84] sm:$0xf]
    %v1107 = vld [vmem:[%s1072 + $0x88] sm:$0xf]
    %v1108 = vld [vmem:[%s1072 + $0x8c] sm:$0xf]
    %v1109 = vld [vmem:[%s1072 + $0x90] sm:$0xf]
    %v1110 = vld [vmem:[%s1072 + $0x94] sm:$0xf]
    %v1111 = vld [vmem:[%s1072 + $0x98] sm:$0xf]
    %v1112 = vld [vmem:[%s1072 + $0x9c] sm:$0xf]
    %v1113 = vld [vmem:[%s1072 + $0xa0] sm:$0xf]
    %v1114 = vld [vmem:[%s1072 + $0xa4] sm:$0xf]
    %v1115 = vld [vmem:[%s1072 + $0xa8] sm:$0xf]
    %v1116 = vld [vmem:[%s1072 + $0xac] sm:$0xf]
    %v1117 = vld [vmem:[%s1072 + $0xb0] sm:$0xf]
    %v1118 = vld [vmem:[%s1072 + $0xb4] sm:$0xf]
    %v1119 = vld [vmem:[%s1072 + $0xb8] sm:$0xf]
    %v1120 = vld [vmem:[%s1072 + $0xbc] sm:$0xf]
    %s1121 = scalar_lea.vmem %s4, 2
    %v1122 = vld [vmem:[%s1121] sm:$0x1]
    %v1124 = vlaneseq
    %v1125 = vshrl.u32 %v1124, 7
    %v1126 = vsub.s32 0, %v1125
    %v1127 = vrot.slane %v1122, %v1126
    %v1177 = vunpack.c.l.b16 %v1073
    %v1178 = vunpack.c.l.b16 %v1074
    %v1179 = vunpack.c.l.b16 %v1075
    %v1180 = vunpack.c.l.b16 %v1076
    %v1181 = vunpack.c.l.b16 %v1077
    %v1182 = vunpack.c.l.b16 %v1078
    %v1183 = vunpack.c.l.b16 %v1079
    %v1184 = vunpack.c.l.b16 %v1080
    %v1185 = vunpack.c.l.b16 %v1081
    %v1186 = vunpack.c.l.b16 %v1082
    %v1187 = vunpack.c.l.b16 %v1083
    %v1188 = vunpack.c.l.b16 %v1084
    %v1189 = vunpack.c.l.b16 %v1085
    %v1190 = vunpack.c.l.b16 %v1086
    %v1191 = vunpack.c.l.b16 %v1087
    %v1192 = vunpack.c.l.b16 %v1088
    %v1193 = vunpack.c.l.b16 %v1089
    %v1194 = vunpack.c.l.b16 %v1090
    %v1195 = vunpack.c.l.b16 %v1091
    %v1196 = vunpack.c.l.b16 %v1092
    %v1197 = vunpack.c.l.b16 %v1093
    %v1198 = vunpack.c.l.b16 %v1094
    %v1199 = vunpack.c.l.b16 %v1095
    %v1200 = vunpack.c.l.b16 %v1096
    %v1201 = vunpack.c.l.b16 %v1097
    %v1202 = vunpack.c.l.b16 %v1098
    %v1203 = vunpack.c.l.b16 %v1099
    %v1204 = vunpack.c.l.b16 %v1100
    %v1205 = vunpack.c.l.b16 %v1101
    %v1206 = vunpack.c.l.b16 %v1102
    %v1207 = vunpack.c.l.b16 %v1103
    %v1208 = vunpack.c.l.b16 %v1104
    %v1209 = vunpack.c.l.b16 %v1105
    %v1210 = vunpack.c.l.b16 %v1106
    %v1211 = vunpack.c.l.b16 %v1107
    %v1212 = vunpack.c.l.b16 %v1108
    %v1213 = vunpack.c.l.b16 %v1109
    %v1214 = vunpack.c.l.b16 %v1110
    %v1215 = vunpack.c.l.b16 %v1111
    %v1216 = vunpack.c.l.b16 %v1112
    %v1217 = vunpack.c.l.b16 %v1113
    %v1218 = vunpack.c.l.b16 %v1114
    %v1219 = vunpack.c.l.b16 %v1115
    %v1220 = vunpack.c.l.b16 %v1116
    %v1221 = vunpack.c.l.b16 %v1117
    %v1222 = vunpack.c.l.b16 %v1118
    %v1223 = vunpack.c.l.b16 %v1119
    %v1224 = vunpack.c.l.b16 %v1120
    %v1225 = vpack.c.b16 %v1178, %v1177
    %v1226 = vpack.c.b16 %v1180, %v1179
    %v1227 = vpack.c.b16 %v1182, %v1181
    %v1228 = vpack.c.b16 %v1184, %v1183
    %v1229 = vpack.c.b16 %v1186, %v1185
    %v1230 = vpack.c.b16 %v1188, %v1187
    %v1231 = vpack.c.b16 %v1190, %v1189
    %v1232 = vpack.c.b16 %v1192, %v1191
    %v1233 = vpack.c.b16 %v1194, %v1193
    %v1234 = vpack.c.b16 %v1196, %v1195
    %v1235 = vpack.c.b16 %v1198, %v1197
    %v1236 = vpack.c.b16 %v1200, %v1199
    %v1237 = vpack.c.b16 %v1202, %v1201
    %v1238 = vpack.c.b16 %v1204, %v1203
    %v1239 = vpack.c.b16 %v1206, %v1205
    %v1240 = vpack.c.b16 %v1208, %v1207
    %v1241 = vpack.c.b16 %v1210, %v1209
    %v1242 = vpack.c.b16 %v1212, %v1211
    %v1243 = vpack.c.b16 %v1214, %v1213
    %v1244 = vpack.c.b16 %v1216, %v1215
    %v1245 = vpack.c.b16 %v1218, %v1217
    %v1246 = vpack.c.b16 %v1220, %v1219
    %v1247 = vpack.c.b16 %v1222, %v1221
    %v1248 = vpack.c.b16 %v1224, %v1223
    %1273 = vmatprep.subr.bf16.mxu0 0
    %1274 = vmatpush1.bf16.msra.mxu0 %v1225
    %1275 = vmatprep.subr.bf16.mxu0 0
    %1276 = vmatpush1.bf16.msra.mxu0 %v1226
    %1277 = vmatprep.subr.bf16.mxu0 0
    %1278 = vmatpush1.bf16.msra.mxu0 %v1227
    %1279 = vmatprep.subr.bf16.mxu0 0
    %1280 = vmatpush1.bf16.msra.mxu0 %v1228
    %1281 = vmatprep.subr.bf16.mxu0 0
    %1282 = vmatpush1.bf16.msra.mxu0 %v1229
    %1283 = vmatprep.subr.bf16.mxu0 0
    %1284 = vmatpush1.bf16.msra.mxu0 %v1230
    %1285 = vmatprep.subr.bf16.mxu0 0
    %1286 = vmatpush1.bf16.msra.mxu0 %v1231
    %1287 = vmatprep.subr.bf16.mxu0 0
    %1288 = vmatpush1.bf16.msra.mxu0 %v1232
    %1289 = vmatprep.subr.bf16.mxu0 0
    %1290 = vmatpush1.bf16.msra.mxu0 %v1233
    %1291 = vmatprep.subr.bf16.mxu0 0
    %1292 = vmatpush1.bf16.msra.mxu0 %v1234
    %1293 = vmatprep.subr.bf16.mxu0 0
    %1294 = vmatpush1.bf16.msra.mxu0 %v1235
    %1295 = vmatprep.subr.bf16.mxu0 0
    %1296 = vmatpush1.bf16.msra.mxu0 %v1236
    %1297 = vmatprep.subr.bf16.mxu0 0
    %1298 = vmatpush1.bf16.msra.mxu0 %v1237
    %1299 = vmatprep.subr.bf16.mxu0 0
    %1300 = vmatpush1.bf16.msra.mxu0 %v1238
    %1301 = vmatprep.subr.bf16.mxu0 0
    %1302 = vmatpush1.bf16.msra.mxu0 %v1239
    %1303 = vmatprep.subr.bf16.mxu0 0
    %1304 = vmatpush1.bf16.msra.mxu0 %v1240
    %1305 = vmatprep.mubr.bf16.mxu0 %v1011
    %1306 = vmatmul.mubr.bf16.gmra.mrb[0].mxu0 %v960
    %v1307 = vpop.f32.mrb[0].mxu0
    %v1308 = vadd.f32 %v1127, %v1307
    %v1309 = vpop.f32.mrb[0].mxu0
    %v1310 = vpop.f32.mrb[0].mxu0
    %v1311 = vadd.f32 %v1127, %v1310
    %v1312 = vpop.f32.mrb[0].mxu0
    %1313 = vmatprep.mubr.bf16.mxu0 %v1012
    %1314 = vmatmul.mubr.bf16.gmra.mrb[0].mxu0 %v961
    %v1315 = vpop.f32.mrb[0].mxu0
    %v1316 = vadd.f32 %v1127, %v1315
    %v1317 = vpop.f32.mrb[0].mxu0
    %v1318 = vpop.f32.mrb[0].mxu0
    %v1319 = vadd.f32 %v1127, %v1318
    %v1320 = vpop.f32.mrb[0].mxu0
    %1321 = vdwg.mxu0
    %1322 = vmatprep.subr.bf16.mxu0 0
    %1323 = vmatpush1.bf16.msra.mxu0 %v1241
    %1324 = vmatprep.subr.bf16.mxu0 0
    %1325 = vmatpush1.bf16.msra.mxu0 %v1242
    %1326 = vmatprep.subr.bf16.mxu0 0
    %1327 = vmatpush1.bf16.msra.mxu0 %v1243
    %1328 = vmatprep.subr.bf16.mxu0 0
    %1329 = vmatpush1.bf16.msra.mxu0 %v1244
    %1330 = vmatprep.subr.bf16.mxu0 0
    %1331 = vmatpush1.bf16.msra.mxu0 %v1245
    %1332 = vmatprep.subr.bf16.mxu0 0
    %1333 = vmatpush1.bf16.msra.mxu0 %v1246
    %1334 = vmatprep.subr.bf16.mxu0 0
    %1335 = vmatpush1.bf16.msra.mxu0 %v1247
    %1336 = vmatprep.subr.bf16.mxu0 0
    %1337 = vmatpush1.bf16.msra.mxu0 %v1248
    %1338 = vmatprep.subr.bf16.mxu0 0
    %1339 = vmatpush1.bf16.msra.mxu0 0
    %1340 = vmatprep.subr.bf16.mxu0 0
    %1341 = vmatpush1.bf16.msra.mxu0 0
    %1342 = vmatprep.subr.bf16.mxu0 0
    %1343 = vmatpush1.bf16.msra.mxu0 0
    %1344 = vmatprep.subr.bf16.mxu0 0
    %1345 = vmatpush1.bf16.msra.mxu0 0
    %1346 = vmatprep.subr.bf16.mxu0 0
    %1347 = vmatpush1.bf16.msra.mxu0 0
    %1348 = vmatprep.subr.bf16.mxu0 0
    %1349 = vmatpush1.bf16.msra.mxu0 0
    %1350 = vmatprep.subr.bf16.mxu0 0
    %1351 = vmatpush1.bf16.msra.mxu0 0
    %1352 = vmatprep.subr.bf16.mxu0 0
    %1353 = vmatpush1.bf16.msra.mxu0 0
    %1354 = vmatprep.mubr.bf16.mxu0 0
    %1355 = vmatmul.mubr.bf16.gmra.mrb[0].mxu0 %v1070
    %v1356 = vpop.f32.mrb[0].mxu0
    %v1357 = vadd.f32 %v1308, %v1356
    %v1358 = vpop.f32.mrb[0].mxu0
    %v1359 = vpop.f32.mrb[0].mxu0
    %v1360 = vadd.f32 %v1311, %v1359
    %v1361 = vpop.f32.mrb[0].mxu0
    %1362 = vmatprep.mubr.bf16.mxu0 0
    %1363 = vmatmul.mubr.bf16.gmra.mrb[0].mxu0 %v1071
    %v1364 = vpop.f32.mrb[0].mxu0
    %v1365 = vadd.f32 %v1316, %v1364
    %v1366 = vpop.f32.mrb[0].mxu0
    %v1367 = vpop.f32.mrb[0].mxu0
    %v1368 = vadd.f32 %v1319, %v1367
    %v1369 = vpop.f32.mrb[0].mxu0
    %1370 = vdwg.mxu0
    %v1371 = vmax.f32 %v1357, 0.0
    %v1372 = vmax.f32 %v1360, 0.0
    %v1373 = vmax.f32 %v1365, 0.0
    %v1374 = vmax.f32 %v1368, 0.0
    %v1375 = vlaneseq
    %v1376 = vand.u32 %v1375, 127
    %vm1377 = vcmp.lt.s32.totalorder %v1376, 8
    %v1378 = vsel %vm1377, %v1371, -1e+30
    %v1379 = vsel %vm1377, %v1372, -1e+30
    %v1380 = vsel %vm1377, %v1373, -1e+30
    %v1381 = vsel %vm1377, %v1374, -1e+30
    %1382 = vmax.xlane.f32.xlu0 %v1378
    %v1383 = vpop.xlane.xlu0 %1382
    %1384 = vmax.xlane.f32.xlu0 %v1379
    %v1385 = vpop.xlane.xlu0 %1384
    %1386 = vmax.xlane.f32.xlu0 %v1380
    %v1387 = vpop.xlane.xlu0 %1386
    %1388 = vmax.xlane.f32.xlu0 %v1381
    %v1389 = vpop.xlane.xlu0 %1388
    %v1390 = vsub.f32 %v1378, %v1383
    %v1391 = vsub.f32 %v1379, %v1385
    %v1392 = vsub.f32 %v1380, %v1387
    %v1393 = vsub.f32 %v1381, %v1389
    %v1394 = vmul.f32 %v1390, 1.442695
    %v1395 = vpow.pop %v1394
    %v1396 = vmul.f32 %v1391, 1.442695
    %v1397 = vpow.pop %v1396
    %v1398 = vmul.f32 %v1392, 1.442695
    %v1399 = vpow.pop %v1398
    %v1400 = vmul.f32 %v1393, 1.442695
    %v1401 = vpow.pop %v1400
    %1402 = vadd.xlane.f32.xlu0 %v1395
    %v1403 = vpop.xlane.xlu0 %1402
    %1404 = vadd.xlane.f32.xlu0 %v1397
    %v1405 = vpop.xlane.xlu0 %1404
    %1406 = vadd.xlane.f32.xlu0 %v1399
    %v1407 = vpop.xlane.xlu0 %1406
    %1408 = vadd.xlane.f32.xlu0 %v1401
    %v1409 = vpop.xlane.xlu0 %1408
    %v1410 = vlog2.pop %v1403
    %v1411 = vmul.f32 %v1410, 0.6931472
    %v1412 = vlog2.pop %v1405
    %v1413 = vmul.f32 %v1412, 0.6931472
    %v1414 = vlog2.pop %v1407
    %v1415 = vmul.f32 %v1414, 0.6931472
    %v1416 = vlog2.pop %v1409
    %v1417 = vmul.f32 %v1416, 0.6931472
    %v1418 = vsub.f32 %v1390, %v1411
    %v1419 = vsub.f32 %v1391, %v1413
    %v1420 = vsub.f32 %v1392, %v1415
    %v1421 = vsub.f32 %v1393, %v1417
    %v1422 = vsel %vm1377, %v1418, 0.0
    %v1423 = vsel %vm1377, %v1419, 0.0
    %v1424 = vsel %vm1377, %v1420, 0.0
    %v1425 = vsel %vm1377, %v1421, 0.0
    %1426 = vst [vmem:[#allocation10] sm:$0xff] %v1422
    %1427 = vst [vmem:[#allocation10 + $0x8] sm:$0xff] %v1423
    %1428 = vst [vmem:[#allocation10 + $0x10] sm:$0xff] %v1424
    %1429 = vst [vmem:[#allocation10 + $0x18] sm:$0xff] %v1425
    // Predicated region
    $region38: #{tpu_custom_call.1} parent=1 // pred_check
      _
    $region39: #{tpu_custom_call.1} parent=1 // pred_check_branch
      %1431 = sbr.rel (0) target = $region41
    $region40: #{tpu_custom_call.1} parent=1 // pred_region
      %s1433 = ssub.s32 512, 512
      %1434 = vsyncadd [#allocation4], %s1433
      %s1435 = sshll.u32 [#allocation10], 4
      %s1436 = int_to_ptr.vmem [resolvable:$true] %s1435
      %1441 = dma.vmem_to_hbm [thread:$0]  %s1436, 512, %s5, [#allocation4], 128, 128, 8
    $region41: #{tpu_custom_call.1} parent=1 // pred_fallthru
      _
    // Predicated region
    $region42: #{tpu_custom_call.1} parent=1 // pred_check
      _
    $region43: #{tpu_custom_call.1} parent=1 // pred_check_branch
      %1443 = sbr.rel (0) target = $region45
    $region44: #{tpu_custom_call.1} parent=1 // pred_region
      %1444 = dma.done [#allocation4], 512
    $region45: #{tpu_custom_call.1} parent=1 // pred_fallthru
      _
    %1445 = vsyncpa [#allocation3], 1
    %1446 = vsyncpa [#allocation6], 1
    %1447 = vsyncpa [#allocation9], 1
    %1448 = vsyncpa [#allocation4], 1

</llo_original>
